<compile_context>
chip_gen: v5e
topology: v5e:2x2
jax: 0.10.0
libtpu: 0.0.40
codegen_flags: <defaults>
</compile_context>

<pallas_src>
import functools

import jax
import jax.numpy as jnp
from jax import lax
from jax.experimental import pallas as pl
from jax.experimental.pallas import tpu as pltpu


# 3x3 tap offsets; tap index = (dh + 1) * 3 + (dw + 1) matches OIHW kh*3 + kw.
_TAPS = tuple((dh, dw) for dh in (-1, 0, 1) for dw in (-1, 0, 1))


def _br_kernel(W, x_ref, mask_ref, w1_ref, w2_ref, out_ref):
    """Fused conv3x3 -> ReLU -> conv3x3 -> +residual for one lane block.

    x_ref   : (Cpad, L)       input, channels zero-padded to Cpad=8
    mask_ref: (9, L)          per-tap in-image masks (1.0 / 0.0)
    w1_ref  : (cmid, 9*Cpad)  conv1 im2col weights
    w2_ref  : (9, C, cmid)    conv2 per-tap weights
    out_ref : (C, L)
    """
    L = x_ref.shape[1]
    x = x_ref[...]                                        # (Cpad, L), f32

    def tap(arr, t):
        """arr shifted so column p holds the pixel at offset (dh, dw); zero
        outside the image (mask handles padding AND image boundaries)."""
        dh, dw = _TAPS[t]
        if dh == 0 and dw == 0:
            return arr
        off = dh * W + dw
        shifted = pltpu.roll(arr, (-off) % L, 1)          # XLU lane rotate
        return shifted * mask_ref[pl.ds(t, 1), :]         # one VPU select/mul

    # --- conv1 + ReLU as ONE padded im2col matmul: (cmid,72) @ (72,L) ------
    cols1 = jnp.concatenate([tap(x, t) for t in range(9)], axis=0)  # (72, L)
    mid = jnp.maximum(
        jnp.dot(w1_ref[...], cols1, preferred_element_type=jnp.float32), 0.0
    )                                                     # (cmid, L)

    # --- conv2 per-tap accumulation (K=cmid), no (9*cmid, L) cols buffer ---
    acc = jnp.dot(w2_ref[4], mid, preferred_element_type=jnp.float32)  # center
    for t in (0, 1, 2, 3, 5, 6, 7, 8):
        acc = acc + jnp.dot(w2_ref[t], tap(mid, t),
                            preferred_element_type=jnp.float32)

    # --- residual add + lane-dense store ------------------------------------
    c_out = out_ref.shape[0]
    out_ref[...] = (acc + x[:c_out, :]).astype(out_ref.dtype)


def br_forward(x_nchw, w1_oihw, w2_oihw):
    """BR.forward.  x: (B, C, H, W) f32; weights in PyTorch OIHW layout."""
    B, C, H, W = x_nchw.shape
    cmid = w1_oihw.shape[0]                               # 16 * C
    HW = H * W
    Cpad = ((C + 7) // 8) * 8                             # sublane-aligned cin

    # Grid: single wide step for tiny batches; split into 2 parallel steps
    # (v7x: 2 TensorCores) only if each half keeps >= 2048 lanes.
    if B % 2 == 0 and (B // 2) * HW >= 2048:
        images_per_step = B // 2
    else:
        images_per_step = B
    num_steps = B // images_per_step
    L = images_per_step * HW                              # lanes per grid step

    # --- input: batch folded onto lanes, channels padded to Cpad -----------
    x_cb = jnp.transpose(x_nchw, (1, 0, 2, 3)).reshape(C, B * HW)
    x_pad = jnp.pad(x_cb, ((0, Cpad - C), (0, 0))) if Cpad > C else x_cb

    # --- per-tap edge masks (periodic in HW, shared by all grid steps) -----
    p = jnp.arange(L, dtype=jnp.int32)
    q = p % HW
    hh = q // W
    ww = q % W
    mask_rows = []
    for dh, dw in _TAPS:
        valid = (hh + dh >= 0) & (hh + dh < H) & (ww + dw >= 0) & (ww + dw < W)
        mask_rows.append(valid)
    mask = jnp.stack(mask_rows, axis=0).astype(x_nchw.dtype)     # (9, L)

    # --- conv1 weights: lane-dense padded im2col tile (cmid, 9*Cpad) -------
    #   w1_flat[co, tap*Cpad + ci] = W1[co, ci, kh, kw],  tap = kh*3 + kw
    w1t = jnp.transpose(w1_oihw, (0, 2, 3, 1)).reshape(cmid, 9, C)
    if Cpad > C:
        w1t = jnp.pad(w1t, ((0, 0), (0, 0), (0, Cpad - C)))
    w1_flat = w1t.reshape(cmid, 9 * Cpad)

    # --- conv2 weights per tap: (9, cout, cmid) -----------------------------
    w2_taps = jnp.transpose(w2_oihw, (2, 3, 0, 1)).reshape(9, C, cmid)

    kernel = functools.partial(_br_kernel, W)
    out_flat = pl.pallas_call(
        kernel,
        out_shape=jax.ShapeDtypeStruct((C, B * HW), x_nchw.dtype),
        grid=(num_steps,),
        in_specs=[
            pl.BlockSpec((Cpad, L), lambda g: (0, g)),
            pl.BlockSpec((9, L), lambda g: (0, 0)),
            pl.BlockSpec((cmid, 9 * Cpad), lambda g: (0, 0)),
            pl.BlockSpec((9, C, cmid), lambda g: (0, 0, 0)),
        ],
        out_specs=pl.BlockSpec((C, L), lambda g: (0, g)),
        compiler_params=pltpu.CompilerParams(
            dimension_semantics=("parallel",),
        ),
    )(x_pad, mask, w1_flat, w2_taps)

    return jnp.transpose(out_flat.reshape(C, B, H, W), (1, 0, 2, 3))


def br_forward_ref(x_nchw, w1_oihw, w2_oihw):
    """Pure-JAX reference (matches PyTorch Conv2d k=3, s=1, p=1, bias=False)."""
    dn = ("NCHW", "OIHW", "NCHW")
    mid = lax.conv_general_dilated(x_nchw, w1_oihw, (1, 1), "SAME",
                                   dimension_numbers=dn)
    mid = jnp.maximum(mid, 0.0)
    out = lax.conv_general_dilated(mid, w2_oihw, (1, 1), "SAME",
                                   dimension_numbers=dn)
    return out + x_nchw


if __name__ == "__main__":
    num_classes = 4            # Cin = Cout = num_classes; hidden = 16 * num_classes
    B, H, W = 2, 16, 16
    c_mid = num_classes * 16

    key = jax.random.PRNGKey(0)
    kx, k1, k2 = jax.random.split(key, 3)

    x = jax.random.normal(kx, (B, num_classes, H, W), dtype=jnp.float32)
    # Deterministic synthetic weights in PyTorch OIHW layout.
    w1 = jax.random.normal(k1, (c_mid, num_classes, 3, 3), jnp.float32) * 0.1
    w2 = jax.random.normal(k2, (num_classes, c_mid, 3, 3), jnp.float32) * 0.05

    out = jax.jit(br_forward)(x, w1, w2)
    out = jax.block_until_ready(out)

    ref = br_forward_ref(x, w1, w2)
    assert out.shape == (B, num_classes, H, W)
    assert jnp.allclose(out, ref, atol=2e-4, rtol=2e-4), "mismatch vs reference"

    print("KERNEL_OK")
</pallas_src>

<mosaic_0001>
module attributes {stable_mosaic.version = 11 : i64} {
  func.func @_br_kernel(%arg0: i32, %arg1: memref<8x512xf32, #tpu.memory_space<vmem>>, %arg2: memref<9x512xf32, #tpu.memory_space<vmem>>, %arg3: memref<64x72xf32, #tpu.memory_space<vmem>>, %arg4: memref<9x4x64xf32, #tpu.memory_space<vmem>>, %arg5: memref<4x512xf32, #tpu.memory_space<vmem>>) attributes {dimension_semantics = [#tpu.dimension_semantics<parallel>], iteration_bounds = array<i64: 1>, scalar_prefetch = 0 : i64, scratch_operands = 0 : i64, tpu.core_type = #tpu.core_type<tc>, window_params = [{transform_indices = @transform_0, window_bounds = array<i64: 8, 512>}, {pipeline_mode = #tpu.pipeline_mode<synchronous>, transform_indices = @transform_1, window_bounds = array<i64: 9, 512>}, {pipeline_mode = #tpu.pipeline_mode<synchronous>, transform_indices = @transform_2, window_bounds = array<i64: 64, 72>}, {pipeline_mode = #tpu.pipeline_mode<synchronous>, transform_indices = @transform_3, window_bounds = array<i64: 9, 4, 64>}, {transform_indices = @transform_4, window_bounds = array<i64: 4, 512>}]} {
    %c0 = arith.constant 0 : index
    %c0_0 = arith.constant 0 : index
    %0 = vector.load %arg1[%c0, %c0_0] : memref<8x512xf32, #tpu.memory_space<vmem>>, vector<8x512xf32>
    %c17_i32 = arith.constant 17 : i32
    %1 = tpu.dynamic_rotate %0 by %c17_i32 dim 1 : vector<8x512xf32>, i32 -> vector<8x512xf32>
    %c0_1 = arith.constant 0 : index
    %c0_2 = arith.constant 0 : index
    %2 = vector.load %arg2[%c0_1, %c0_2] : memref<9x512xf32, #tpu.memory_space<vmem>>, vector<1x512xf32>
    %3 = vector.broadcast %2 : vector<1x512xf32> to vector<8x512xf32>
    %4 = arith.mulf %1, %3 : vector<8x512xf32>
    %c16_i32 = arith.constant 16 : i32
    %5 = tpu.dynamic_rotate %0 by %c16_i32 dim 1 : vector<8x512xf32>, i32 -> vector<8x512xf32>
    %c1 = arith.constant 1 : index
    %c0_3 = arith.constant 0 : index
    %6 = vector.load %arg2[%c1, %c0_3] : memref<9x512xf32, #tpu.memory_space<vmem>>, vector<1x512xf32>
    %7 = vector.broadcast %6 : vector<1x512xf32> to vector<8x512xf32>
    %8 = arith.mulf %5, %7 : vector<8x512xf32>
    %c15_i32 = arith.constant 15 : i32
    %9 = tpu.dynamic_rotate %0 by %c15_i32 dim 1 : vector<8x512xf32>, i32 -> vector<8x512xf32>
    %c2 = arith.constant 2 : index
    %c0_4 = arith.constant 0 : index
    %10 = vector.load %arg2[%c2, %c0_4] : memref<9x512xf32, #tpu.memory_space<vmem>>, vector<1x512xf32>
    %11 = vector.broadcast %10 : vector<1x512xf32> to vector<8x512xf32>
    %12 = arith.mulf %9, %11 : vector<8x512xf32>
    %c1_i32 = arith.constant 1 : i32
    %13 = tpu.dynamic_rotate %0 by %c1_i32 dim 1 : vector<8x512xf32>, i32 -> vector<8x512xf32>
    %c3 = arith.constant 3 : index
    %c0_5 = arith.constant 0 : index
    %14 = vector.load %arg2[%c3, %c0_5] : memref<9x512xf32, #tpu.memory_space<vmem>>, vector<1x512xf32>
    %15 = vector.broadcast %14 : vector<1x512xf32> to vector<8x512xf32>
    %16 = arith.mulf %13, %15 : vector<8x512xf32>
    %c511_i32 = arith.constant 511 : i32
    %17 = tpu.dynamic_rotate %0 by %c511_i32 dim 1 : vector<8x512xf32>, i32 -> vector<8x512xf32>
    %c5 = arith.constant 5 : index
    %c0_6 = arith.constant 0 : index
    %18 = vector.load %arg2[%c5, %c0_6] : memref<9x512xf32, #tpu.memory_space<vmem>>, vector<1x512xf32>
    %19 = vector.broadcast %18 : vector<1x512xf32> to vector<8x512xf32>
    %20 = arith.mulf %17, %19 : vector<8x512xf32>
    %c497_i32 = arith.constant 497 : i32
    %21 = tpu.dynamic_rotate %0 by %c497_i32 dim 1 : vector<8x512xf32>, i32 -> vector<8x512xf32>
    %c6 = arith.constant 6 : index
    %c0_7 = arith.constant 0 : index
    %22 = vector.load %arg2[%c6, %c0_7] : memref<9x512xf32, #tpu.memory_space<vmem>>, vector<1x512xf32>
    %23 = vector.broadcast %22 : vector<1x512xf32> to vector<8x512xf32>
    %24 = arith.mulf %21, %23 : vector<8x512xf32>
    %c496_i32 = arith.constant 496 : i32
    %25 = tpu.dynamic_rotate %0 by %c496_i32 dim 1 : vector<8x512xf32>, i32 -> vector<8x512xf32>
    %c7 = arith.constant 7 : index
    %c0_8 = arith.constant 0 : index
    %26 = vector.load %arg2[%c7, %c0_8] : memref<9x512xf32, #tpu.memory_space<vmem>>, vector<1x512xf32>
    %27 = vector.broadcast %26 : vector<1x512xf32> to vector<8x512xf32>
    %28 = arith.mulf %25, %27 : vector<8x512xf32>
    %c495_i32 = arith.constant 495 : i32
    %29 = tpu.dynamic_rotate %0 by %c495_i32 dim 1 : vector<8x512xf32>, i32 -> vector<8x512xf32>
    %c8 = arith.constant 8 : index
    %c0_9 = arith.constant 0 : index
    %30 = vector.load %arg2[%c8, %c0_9] : memref<9x512xf32, #tpu.memory_space<vmem>>, vector<1x512xf32>
    %31 = vector.broadcast %30 : vector<1x512xf32> to vector<8x512xf32>
    %32 = arith.mulf %29, %31 : vector<8x512xf32>
    %33 = tpu.concatenate %4, %8, %12, %16, %0, %20, %24, %28, %32 in 0 : vector<8x512xf32>, vector<8x512xf32>, vector<8x512xf32>, vector<8x512xf32>, vector<8x512xf32>, vector<8x512xf32>, vector<8x512xf32>, vector<8x512xf32>, vector<8x512xf32> -> vector<72x512xf32>
    %c0_10 = arith.constant 0 : index
    %c0_11 = arith.constant 0 : index
    %34 = vector.load %arg3[%c0_10, %c0_11] : memref<64x72xf32, #tpu.memory_space<vmem>>, vector<64x72xf32>
    %cst = arith.constant dense<0.000000e+00> : vector<64x512xf32>
    %35 = tpu.matmul %34, %33, %cst {dimension_numbers = #tpu.dot_dimension_numbers<[1], [0], [0], [1], [0, 0, 1, 1], [], []>} : vector<64x72xf32>, vector<72x512xf32>, vector<64x512xf32> -> vector<64x512xf32>
    %cst_12 = arith.constant 0.000000e+00 : f32
    %36 = vector.broadcast %cst_12 : f32 to vector<64x512xf32>
    %37 = arith.maximumf %35, %36 : vector<64x512xf32>
    %c4 = arith.constant 4 : index
    %c0_13 = arith.constant 0 : index
    %c0_14 = arith.constant 0 : index
    %38 = vector.load %arg4[%c4, %c0_13, %c0_14] : memref<9x4x64xf32, #tpu.memory_space<vmem>>, vector<1x4x64xf32>
    %39 = vector.shape_cast %38 : vector<1x4x64xf32> to vector<4x64xf32>
    %cst_15 = arith.constant dense<0.000000e+00> : vector<4x512xf32>
    %40 = tpu.matmul %39, %37, %cst_15 {dimension_numbers = #tpu.dot_dimension_numbers<[1], [0], [0], [1], [0, 0, 1, 1], [], []>} : vector<4x64xf32>, vector<64x512xf32>, vector<4x512xf32> -> vector<4x512xf32>
    %c0_16 = arith.constant 0 : index
    %c0_17 = arith.constant 0 : index
    %c0_18 = arith.constant 0 : index
    %41 = vector.load %arg4[%c0_16, %c0_17, %c0_18] : memref<9x4x64xf32, #tpu.memory_space<vmem>>, vector<1x4x64xf32>
    %42 = vector.shape_cast %41 : vector<1x4x64xf32> to vector<4x64xf32>
    %c17_i32_19 = arith.constant 17 : i32
    %43 = tpu.dynamic_rotate %37 by %c17_i32_19 dim 1 : vector<64x512xf32>, i32 -> vector<64x512xf32>
    %c0_20 = arith.constant 0 : index
    %c0_21 = arith.constant 0 : index
    %44 = vector.load %arg2[%c0_20, %c0_21] : memref<9x512xf32, #tpu.memory_space<vmem>>, vector<1x512xf32>
    %45 = vector.broadcast %44 : vector<1x512xf32> to vector<64x512xf32>
    %46 = arith.mulf %43, %45 : vector<64x512xf32>
    %cst_22 = arith.constant dense<0.000000e+00> : vector<4x512xf32>
    %47 = tpu.matmul %42, %46, %cst_22 {dimension_numbers = #tpu.dot_dimension_numbers<[1], [0], [0], [1], [0, 0, 1, 1], [], []>} : vector<4x64xf32>, vector<64x512xf32>, vector<4x512xf32> -> vector<4x512xf32>
    %48 = arith.addf %40, %47 : vector<4x512xf32>
    %c1_23 = arith.constant 1 : index
    %c0_24 = arith.constant 0 : index
    %c0_25 = arith.constant 0 : index
    %49 = vector.load %arg4[%c1_23, %c0_24, %c0_25] : memref<9x4x64xf32, #tpu.memory_space<vmem>>, vector<1x4x64xf32>
    %50 = vector.shape_cast %49 : vector<1x4x64xf32> to vector<4x64xf32>
    %c16_i32_26 = arith.constant 16 : i32
    %51 = tpu.dynamic_rotate %37 by %c16_i32_26 dim 1 : vector<64x512xf32>, i32 -> vector<64x512xf32>
    %c1_27 = arith.constant 1 : index
    %c0_28 = arith.constant 0 : index
    %52 = vector.load %arg2[%c1_27, %c0_28] : memref<9x512xf32, #tpu.memory_space<vmem>>, vector<1x512xf32>
    %53 = vector.broadcast %52 : vector<1x512xf32> to vector<64x512xf32>
    %54 = arith.mulf %51, %53 : vector<64x512xf32>
    %cst_29 = arith.constant dense<0.000000e+00> : vector<4x512xf32>
    %55 = tpu.matmul %50, %54, %cst_29 {dimension_numbers = #tpu.dot_dimension_numbers<[1], [0], [0], [1], [0, 0, 1, 1], [], []>} : vector<4x64xf32>, vector<64x512xf32>, vector<4x512xf32> -> vector<4x512xf32>
    %56 = arith.addf %48, %55 : vector<4x512xf32>
    %c2_30 = arith.constant 2 : index
    %c0_31 = arith.constant 0 : index
    %c0_32 = arith.constant 0 : index
    %57 = vector.load %arg4[%c2_30, %c0_31, %c0_32] : memref<9x4x64xf32, #tpu.memory_space<vmem>>, vector<1x4x64xf32>
    %58 = vector.shape_cast %57 : vector<1x4x64xf32> to vector<4x64xf32>
    %c15_i32_33 = arith.constant 15 : i32
    %59 = tpu.dynamic_rotate %37 by %c15_i32_33 dim 1 : vector<64x512xf32>, i32 -> vector<64x512xf32>
    %c2_34 = arith.constant 2 : index
    %c0_35 = arith.constant 0 : index
    %60 = vector.load %arg2[%c2_34, %c0_35] : memref<9x512xf32, #tpu.memory_space<vmem>>, vector<1x512xf32>
    %61 = vector.broadcast %60 : vector<1x512xf32> to vector<64x512xf32>
    %62 = arith.mulf %59, %61 : vector<64x512xf32>
    %cst_36 = arith.constant dense<0.000000e+00> : vector<4x512xf32>
    %63 = tpu.matmul %58, %62, %cst_36 {dimension_numbers = #tpu.dot_dimension_numbers<[1], [0], [0], [1], [0, 0, 1, 1], [], []>} : vector<4x64xf32>, vector<64x512xf32>, vector<4x512xf32> -> vector<4x512xf32>
    %64 = arith.addf %56, %63 : vector<4x512xf32>
    %c3_37 = arith.constant 3 : index
    %c0_38 = arith.constant 0 : index
    %c0_39 = arith.constant 0 : index
    %65 = vector.load %arg4[%c3_37, %c0_38, %c0_39] : memref<9x4x64xf32, #tpu.memory_space<vmem>>, vector<1x4x64xf32>
    %66 = vector.shape_cast %65 : vector<1x4x64xf32> to vector<4x64xf32>
    %c1_i32_40 = arith.constant 1 : i32
    %67 = tpu.dynamic_rotate %37 by %c1_i32_40 dim 1 : vector<64x512xf32>, i32 -> vector<64x512xf32>
    %c3_41 = arith.constant 3 : index
    %c0_42 = arith.constant 0 : index
    %68 = vector.load %arg2[%c3_41, %c0_42] : memref<9x512xf32, #tpu.memory_space<vmem>>, vector<1x512xf32>
    %69 = vector.broadcast %68 : vector<1x512xf32> to vector<64x512xf32>
    %70 = arith.mulf %67, %69 : vector<64x512xf32>
    %cst_43 = arith.constant dense<0.000000e+00> : vector<4x512xf32>
    %71 = tpu.matmul %66, %70, %cst_43 {dimension_numbers = #tpu.dot_dimension_numbers<[1], [0], [0], [1], [0, 0, 1, 1], [], []>} : vector<4x64xf32>, vector<64x512xf32>, vector<4x512xf32> -> vector<4x512xf32>
    %72 = arith.addf %64, %71 : vector<4x512xf32>
    %c5_44 = arith.constant 5 : index
    %c0_45 = arith.constant 0 : index
    %c0_46 = arith.constant 0 : index
    %73 = vector.load %arg4[%c5_44, %c0_45, %c0_46] : memref<9x4x64xf32, #tpu.memory_space<vmem>>, vector<1x4x64xf32>
    %74 = vector.shape_cast %73 : vector<1x4x64xf32> to vector<4x64xf32>
    %c511_i32_47 = arith.constant 511 : i32
    %75 = tpu.dynamic_rotate %37 by %c511_i32_47 dim 1 : vector<64x512xf32>, i32 -> vector<64x512xf32>
    %c5_48 = arith.constant 5 : index
    %c0_49 = arith.constant 0 : index
    %76 = vector.load %arg2[%c5_48, %c0_49] : memref<9x512xf32, #tpu.memory_space<vmem>>, vector<1x512xf32>
    %77 = vector.broadcast %76 : vector<1x512xf32> to vector<64x512xf32>
    %78 = arith.mulf %75, %77 : vector<64x512xf32>
    %cst_50 = arith.constant dense<0.000000e+00> : vector<4x512xf32>
    %79 = tpu.matmul %74, %78, %cst_50 {dimension_numbers = #tpu.dot_dimension_numbers<[1], [0], [0], [1], [0, 0, 1, 1], [], []>} : vector<4x64xf32>, vector<64x512xf32>, vector<4x512xf32> -> vector<4x512xf32>
    %80 = arith.addf %72, %79 : vector<4x512xf32>
    %c6_51 = arith.constant 6 : index
    %c0_52 = arith.constant 0 : index
    %c0_53 = arith.constant 0 : index
    %81 = vector.load %arg4[%c6_51, %c0_52, %c0_53] : memref<9x4x64xf32, #tpu.memory_space<vmem>>, vector<1x4x64xf32>
    %82 = vector.shape_cast %81 : vector<1x4x64xf32> to vector<4x64xf32>
    %c497_i32_54 = arith.constant 497 : i32
    %83 = tpu.dynamic_rotate %37 by %c497_i32_54 dim 1 : vector<64x512xf32>, i32 -> vector<64x512xf32>
    %c6_55 = arith.constant 6 : index
    %c0_56 = arith.constant 0 : index
    %84 = vector.load %arg2[%c6_55, %c0_56] : memref<9x512xf32, #tpu.memory_space<vmem>>, vector<1x512xf32>
    %85 = vector.broadcast %84 : vector<1x512xf32> to vector<64x512xf32>
    %86 = arith.mulf %83, %85 : vector<64x512xf32>
    %cst_57 = arith.constant dense<0.000000e+00> : vector<4x512xf32>
    %87 = tpu.matmul %82, %86, %cst_57 {dimension_numbers = #tpu.dot_dimension_numbers<[1], [0], [0], [1], [0, 0, 1, 1], [], []>} : vector<4x64xf32>, vector<64x512xf32>, vector<4x512xf32> -> vector<4x512xf32>
    %88 = arith.addf %80, %87 : vector<4x512xf32>
    %c7_58 = arith.constant 7 : index
    %c0_59 = arith.constant 0 : index
    %c0_60 = arith.constant 0 : index
    %89 = vector.load %arg4[%c7_58, %c0_59, %c0_60] : memref<9x4x64xf32, #tpu.memory_space<vmem>>, vector<1x4x64xf32>
    %90 = vector.shape_cast %89 : vector<1x4x64xf32> to vector<4x64xf32>
    %c496_i32_61 = arith.constant 496 : i32
    %91 = tpu.dynamic_rotate %37 by %c496_i32_61 dim 1 : vector<64x512xf32>, i32 -> vector<64x512xf32>
    %c7_62 = arith.constant 7 : index
    %c0_63 = arith.constant 0 : index
    %92 = vector.load %arg2[%c7_62, %c0_63] : memref<9x512xf32, #tpu.memory_space<vmem>>, vector<1x512xf32>
    %93 = vector.broadcast %92 : vector<1x512xf32> to vector<64x512xf32>
    %94 = arith.mulf %91, %93 : vector<64x512xf32>
    %cst_64 = arith.constant dense<0.000000e+00> : vector<4x512xf32>
    %95 = tpu.matmul %90, %94, %cst_64 {dimension_numbers = #tpu.dot_dimension_numbers<[1], [0], [0], [1], [0, 0, 1, 1], [], []>} : vector<4x64xf32>, vector<64x512xf32>, vector<4x512xf32> -> vector<4x512xf32>
    %96 = arith.addf %88, %95 : vector<4x512xf32>
    %c8_65 = arith.constant 8 : index
    %c0_66 = arith.constant 0 : index
    %c0_67 = arith.constant 0 : index
    %97 = vector.load %arg4[%c8_65, %c0_66, %c0_67] : memref<9x4x64xf32, #tpu.memory_space<vmem>>, vector<1x4x64xf32>
    %98 = vector.shape_cast %97 : vector<1x4x64xf32> to vector<4x64xf32>
    %c495_i32_68 = arith.constant 495 : i32
    %99 = tpu.dynamic_rotate %37 by %c495_i32_68 dim 1 : vector<64x512xf32>, i32 -> vector<64x512xf32>
    %c8_69 = arith.constant 8 : index
    %c0_70 = arith.constant 0 : index
    %100 = vector.load %arg2[%c8_69, %c0_70] : memref<9x512xf32, #tpu.memory_space<vmem>>, vector<1x512xf32>
    %101 = vector.broadcast %100 : vector<1x512xf32> to vector<64x512xf32>
    %102 = arith.mulf %99, %101 : vector<64x512xf32>
    %cst_71 = arith.constant dense<0.000000e+00> : vector<4x512xf32>
    %103 = tpu.matmul %98, %102, %cst_71 {dimension_numbers = #tpu.dot_dimension_numbers<[1], [0], [0], [1], [0, 0, 1, 1], [], []>} : vector<4x64xf32>, vector<64x512xf32>, vector<4x512xf32> -> vector<4x512xf32>
    %104 = arith.addf %96, %103 : vector<4x512xf32>
    %105 = vector.extract_strided_slice %0 {offsets = [0, 0], sizes = [4, 512], strides = [1, 1]} : vector<8x512xf32> to vector<4x512xf32>
    %106 = arith.addf %104, %105 : vector<4x512xf32>
    %c0_72 = arith.constant 0 : index
    %c0_73 = arith.constant 0 : index
    %107 = vector.load %arg5[%c0_72, %c0_73] : memref<4x512xf32, #tpu.memory_space<vmem>>, vector<4x512xf32>
    tpu.vector_store %arg5[%c0_72, %c0_73], %106 {strides = array<i32>} : memref<4x512xf32, #tpu.memory_space<vmem>>, vector<4x512xf32>,
    return
  }
  func.func @transform_0(%arg0: i32) -> (i32, i32) {
    %c0_i32 = arith.constant 0 : i32
    %c0_i32_0 = arith.constant 0 : i32
    return %c0_i32, %arg0 : i32, i32
  }
  func.func @transform_1(%arg0: i32) -> (i32, i32) {
    %c0_i32 = arith.constant 0 : i32
    %c0_i32_0 = arith.constant 0 : i32
    %c0_i32_1 = arith.constant 0 : i32
    return %c0_i32, %c0_i32_0 : i32, i32
  }
  func.func @transform_2(%arg0: i32) -> (i32, i32) {
    %c0_i32 = arith.constant 0 : i32
    %c0_i32_0 = arith.constant 0 : i32
    %c0_i32_1 = arith.constant 0 : i32
    return %c0_i32, %c0_i32_0 : i32, i32
  }
  func.func @transform_3(%arg0: i32) -> (i32, i32, i32) {
    %c0_i32 = arith.constant 0 : i32
    %c0_i32_0 = arith.constant 0 : i32
    %c0_i32_1 = arith.constant 0 : i32
    %c0_i32_2 = arith.constant 0 : i32
    return %c0_i32, %c0_i32_0, %c0_i32_1 : i32, i32, i32
  }
  func.func @transform_4(%arg0: i32) -> (i32, i32) {
    %c0_i32 = arith.constant 0 : i32
    %c0_i32_0 = arith.constant 0 : i32
    return %c0_i32, %arg0 : i32, i32
  }
}

</mosaic_0001>

<llo_original>
// kernel: br_forward.1
$region0: #{br_forward.1}
  #allocation0 [shape = 'u32[]', space=smem, size = 0x4, offset = 0x4, fixed_abs, tag = 'smem constant byte address 0x4 - core index']
  #allocation1 [shape = 'u32[72,128]{1,0:T(1,128)}', space=vmem, size = 0x9000, scoped, tag = 'internal scratch']
  %s0 = inlined_call_operand.vmem [shape: f32[8,512], index: 0, kind: input, shape index: {}]
  %s1 = inlined_call_operand.vmem [shape: f32[9,512], index: 1, kind: input, shape index: {}]
  %s2 = inlined_call_operand.vmem [shape: f32[64,72], index: 2, kind: input, shape index: {}]
  %s3 = inlined_call_operand.vmem [shape: f32[9,4,64], index: 3, kind: input, shape index: {}]
  %s4 = inlined_call_operand.vmem [shape: f32[4,512], index: 4, kind: output, shape index: {}]
  %s5 = sld [smem:[#allocation0]]
  $region26: #{br_forward.1} parent=0
    _
  %s7 = ssub.s32 1, %s5
  %s8 = scalar_select 0, %s7, %s5
  // Predicated region
  $region2: #{br_forward.1} parent=0 // pred_check
    _
  $region3: #{br_forward.1} parent=0 // pred_check_branch
    %10 = sbr.rel (0) target = $region5
  $region4: #{br_forward.1} parent=0 // pred_region
    _
  $region5: #{br_forward.1} parent=0 // pred_fallthru
    _
  // Predicated region
  $region6: #{br_forward.1} parent=0 // pred_check
    _
  $region7: #{br_forward.1} parent=0 // pred_check_branch
    %12 = sbr.rel (0) target = $region9
  $region8: #{br_forward.1} parent=0 // pred_region
    _
  $region9: #{br_forward.1} parent=0 // pred_fallthru
    _
  // Predicated region
  $region10: #{br_forward.1} parent=0 // pred_check
    _
  $region11: #{br_forward.1} parent=0 // pred_check_branch
    %14 = sbr.rel (0) target = $region13
  $region12: #{br_forward.1} parent=0 // pred_region
    _
  $region13: #{br_forward.1} parent=0 // pred_fallthru
    _
  // Predicated region
  $region14: #{br_forward.1} parent=0 // pred_check
    _
  $region15: #{br_forward.1} parent=0 // pred_check_branch
    %16 = sbr.rel (0) target = $region17
  $region16: #{br_forward.1} parent=0 // pred_region
    _
  $region17: #{br_forward.1} parent=0 // pred_fallthru
    _
  %v17 = vld [vmem:[%s0] sm:$0xff]
  %v18 = vld [vmem:[%s0 + $0x8] sm:$0xff]
  %v19 = vld [vmem:[%s0 + $0x10] sm:$0xff]
  %v20 = vld [vmem:[%s0 + $0x18] sm:$0xff]
  %21 = vrot.lane.b32.xlu0 %v17, 17
  %v22 = vpop.permute.xlu0 %21
  %23 = vrot.lane.b32.xlu0 %v18, 17
  %v24 = vpop.permute.xlu0 %23
  %25 = vrot.lane.b32.xlu0 %v19, 17
  %v26 = vpop.permute.xlu0 %25
  %27 = vrot.lane.b32.xlu0 %v20, 17
  %v28 = vpop.permute.xlu0 %27
  %v29 = vlaneseq
  %v30 = vand.u32 %v29, 127
  %vm31 = vcmp.lt.s32.totalorder %v30, 17
  %v32 = vsel %vm31, %v26, %v28
  %v33 = vsel %vm31, %v24, %v26
  %v34 = vsel %vm31, %v22, %v24
  %v35 = vsel %vm31, %v28, %v22
  %v36 = vld [vmem:[%s1] ss:$8 sm:$0xf]
  %v38 = vperm.slane %v36, 0
  %v39 = vperm.slane %v36, 1
  %v40 = vperm.slane %v36, 2
  %v41 = vperm.slane %v36, 3
  %v46 = vmul.f32 %v35, %v38
  %v47 = vmul.f32 %v34, %v39
  %v48 = vmul.f32 %v33, %v40
  %v49 = vmul.f32 %v32, %v41
  %50 = vrot.lane.b32.xlu0 %v17, 16
  %v51 = vpop.permute.xlu0 %50
  %52 = vrot.lane.b32.xlu0 %v18, 16
  %v53 = vpop.permute.xlu0 %52
  %54 = vrot.lane.b32.xlu0 %v19, 16
  %v55 = vpop.permute.xlu0 %54
  %56 = vrot.lane.b32.xlu0 %v20, 16
  %v57 = vpop.permute.xlu0 %56
  %vm58 = vcmp.lt.s32.totalorder %v30, 16
  %v59 = vsel %vm58, %v55, %v57
  %v60 = vsel %vm58, %v53, %v55
  %v61 = vsel %vm58, %v51, %v53
  %v62 = vsel %vm58, %v57, %v51
  %s63 = scalar_lea.vmem %s1, 1
  %v64 = vld [vmem:[%s63] ss:$8 sm:$0xf]
  %v66 = vperm.slane %v64, 0
  %v67 = vperm.slane %v64, 1
  %v68 = vperm.slane %v64, 2
  %v69 = vperm.slane %v64, 3
  %v74 = vmul.f32 %v62, %v66
  %v75 = vmul.f32 %v61, %v67
  %v76 = vmul.f32 %v60, %v68
  %v77 = vmul.f32 %v59, %v69
  %78 = vrot.lane.b32.xlu0 %v17, 15
  %v79 = vpop.permute.xlu0 %78
  %80 = vrot.lane.b32.xlu0 %v18, 15
  %v81 = vpop.permute.xlu0 %80
  %82 = vrot.lane.b32.xlu0 %v19, 15
  %v83 = vpop.permute.xlu0 %82
  %84 = vrot.lane.b32.xlu0 %v20, 15
  %v85 = vpop.permute.xlu0 %84
  %vm86 = vcmp.lt.s32.totalorder %v30, 15
  %v87 = vsel %vm86, %v83, %v85
  %v88 = vsel %vm86, %v81, %v83
  %v89 = vsel %vm86, %v79, %v81
  %v90 = vsel %vm86, %v85, %v79
  %s91 = scalar_lea.vmem %s1, 2
  %v92 = vld [vmem:[%s91] ss:$8 sm:$0xf]
  %v94 = vperm.slane %v92, 0
  %v95 = vperm.slane %v92, 1
  %v96 = vperm.slane %v92, 2
  %v97 = vperm.slane %v92, 3
  %v102 = vmul.f32 %v90, %v94
  %v103 = vmul.f32 %v89, %v95
  %v104 = vmul.f32 %v88, %v96
  %v105 = vmul.f32 %v87, %v97
  %106 = vrot.lane.b32.xlu0 %v17, 1
  %v107 = vpop.permute.xlu0 %106
  %108 = vrot.lane.b32.xlu0 %v18, 1
  %v109 = vpop.permute.xlu0 %108
  %110 = vrot.lane.b32.xlu0 %v19, 1
  %v111 = vpop.permute.xlu0 %110
  %112 = vrot.lane.b32.xlu0 %v20, 1
  %v113 = vpop.permute.xlu0 %112
  %vm114 = vcmp.lt.s32.totalorder %v30, 1
  %v115 = vsel %vm114, %v111, %v113
  %v116 = vsel %vm114, %v109, %v111
  %v117 = vsel %vm114, %v107, %v109
  %v118 = vsel %vm114, %v113, %v107
  %s119 = scalar_lea.vmem %s1, 3
  %v120 = vld [vmem:[%s119] ss:$8 sm:$0xf]
  %v122 = vperm.slane %v120, 0
  %v123 = vperm.slane %v120, 1
  %v124 = vperm.slane %v120, 2
  %v125 = vperm.slane %v120, 3
  %v130 = vmul.f32 %v118, %v122
  %v131 = vmul.f32 %v117, %v123
  %v132 = vmul.f32 %v116, %v124
  %v133 = vmul.f32 %v115, %v125
  %134 = vrot.lane.b32.xlu0 %v17, 127
  %v135 = vpop.permute.xlu0 %134
  %136 = vrot.lane.b32.xlu0 %v18, 127
  %v137 = vpop.permute.xlu0 %136
  %138 = vrot.lane.b32.xlu0 %v19, 127
  %v139 = vpop.permute.xlu0 %138
  %140 = vrot.lane.b32.xlu0 %v20, 127
  %v141 = vpop.permute.xlu0 %140
  %vm142 = vcmp.lt.s32.totalorder %v30, 127
  %v143 = vsel %vm142, %v139, %v141
  %v144 = vsel %vm142, %v137, %v139
  %v145 = vsel %vm142, %v135, %v137
  %v146 = vsel %vm142, %v141, %v135
  %s147 = scalar_lea.vmem %s1, 5
  %v148 = vld [vmem:[%s147] ss:$8 sm:$0xf]
  %v150 = vperm.slane %v148, 0
  %v151 = vperm.slane %v148, 1
  %v152 = vperm.slane %v148, 2
  %v153 = vperm.slane %v148, 3
  %v158 = vmul.f32 %v145, %v150
  %v159 = vmul.f32 %v144, %v151
  %v160 = vmul.f32 %v143, %v152
  %v161 = vmul.f32 %v146, %v153
  %162 = vrot.lane.b32.xlu0 %v17, 113
  %v163 = vpop.permute.xlu0 %162
  %164 = vrot.lane.b32.xlu0 %v18, 113
  %v165 = vpop.permute.xlu0 %164
  %166 = vrot.lane.b32.xlu0 %v19, 113
  %v167 = vpop.permute.xlu0 %166
  %168 = vrot.lane.b32.xlu0 %v20, 113
  %v169 = vpop.permute.xlu0 %168
  %vm170 = vcmp.lt.s32.totalorder %v30, 113
  %v171 = vsel %vm170, %v167, %v169
  %v172 = vsel %vm170, %v165, %v167
  %v173 = vsel %vm170, %v163, %v165
  %v174 = vsel %vm170, %v169, %v163
  %s175 = scalar_lea.vmem %s1, 6
  %v176 = vld [vmem:[%s175] ss:$8 sm:$0xf]
  %v178 = vperm.slane %v176, 0
  %v179 = vperm.slane %v176, 1
  %v180 = vperm.slane %v176, 2
  %v181 = vperm.slane %v176, 3
  %v186 = vmul.f32 %v173, %v178
  %v187 = vmul.f32 %v172, %v179
  %v188 = vmul.f32 %v171, %v180
  %v189 = vmul.f32 %v174, %v181
  %190 = vrot.lane.b32.xlu0 %v17, 112
  %v191 = vpop.permute.xlu0 %190
  %192 = vrot.lane.b32.xlu0 %v18, 112
  %v193 = vpop.permute.xlu0 %192
  %194 = vrot.lane.b32.xlu0 %v19, 112
  %v195 = vpop.permute.xlu0 %194
  %196 = vrot.lane.b32.xlu0 %v20, 112
  %v197 = vpop.permute.xlu0 %196
  %vm198 = vcmp.lt.s32.totalorder %v30, 112
  %v199 = vsel %vm198, %v195, %v197
  %v200 = vsel %vm198, %v193, %v195
  %v201 = vsel %vm198, %v191, %v193
  %v202 = vsel %vm198, %v197, %v191
  %s203 = scalar_lea.vmem %s1, 7
  %v204 = vld [vmem:[%s203] ss:$8 sm:$0xf]
  %v206 = vperm.slane %v204, 0
  %v207 = vperm.slane %v204, 1
  %v208 = vperm.slane %v204, 2
  %v209 = vperm.slane %v204, 3
  %v214 = vmul.f32 %v201, %v206
  %v215 = vmul.f32 %v200, %v207
  %v216 = vmul.f32 %v199, %v208
  %v217 = vmul.f32 %v202, %v209
  %218 = vrot.lane.b32.xlu0 %v17, 111
  %v219 = vpop.permute.xlu0 %218
  %220 = vrot.lane.b32.xlu0 %v18, 111
  %v221 = vpop.permute.xlu0 %220
  %222 = vrot.lane.b32.xlu0 %v19, 111
  %v223 = vpop.permute.xlu0 %222
  %224 = vrot.lane.b32.xlu0 %v20, 111
  %v225 = vpop.permute.xlu0 %224
  %vm226 = vcmp.lt.s32.totalorder %v30, 111
  %v227 = vsel %vm226, %v223, %v225
  %v228 = vsel %vm226, %v221, %v223
  %v229 = vsel %vm226, %v219, %v221
  %v230 = vsel %vm226, %v225, %v219
  %s231 = scalar_lea.vmem %s1, 32
  %v232 = vld [vmem:[%s231] ss:$8 sm:$0xf]
  %v234 = vperm.slane %v232, 0
  %v235 = vperm.slane %v232, 1
  %v236 = vperm.slane %v232, 2
  %v237 = vperm.slane %v232, 3
  %v242 = vmul.f32 %v229, %v234
  %v243 = vmul.f32 %v228, %v235
  %v244 = vmul.f32 %v227, %v236
  %v245 = vmul.f32 %v230, %v237
  %v246 = vld [vmem:[%s2] sm:$0xff]
  %v247 = vld [vmem:[%s2 + $0x8] sm:$0xff]
  %v248 = vld [vmem:[%s2 + $0x10] sm:$0xff]
  %v249 = vld [vmem:[%s2 + $0x18] sm:$0xff]
  %v250 = vld [vmem:[%s2 + $0x20] sm:$0xff]
  %v251 = vld [vmem:[%s2 + $0x28] sm:$0xff]
  %v252 = vld [vmem:[%s2 + $0x30] sm:$0xff]
  %v253 = vld [vmem:[%s2 + $0x38] sm:$0xff]
  %vm254 = vcmask 588800
  %v256 = vsel %vm254, %v246, 0
  %v259 = vsel %vm254, %v247, 0
  %v262 = vsel %vm254, %v248, 0
  %v265 = vsel %vm254, %v249, 0
  %v268 = vsel %vm254, %v250, 0
  %v271 = vsel %vm254, %v251, 0
  %v274 = vsel %vm254, %v252, 0
  %v277 = vsel %vm254, %v253, 0
  %279 = vmatpush.msra.mxu0 0.0
  %280 = vmatpush.msra.mxu0 0.0
  %281 = vmatpush.msra.mxu0 0.0
  %282 = vmatpush.msra.mxu0 0.0
  %283 = vmatpush.msra.mxu0 0.0
  %284 = vmatpush.msra.mxu0 0.0
  %285 = vmatpush.msra.mxu0 0.0
  %286 = vmatpush.msra.mxu0 %v242
  %287 = vmatpush.msra.mxu0 %v214
  %288 = vmatpush.msra.mxu0 %v186
  %289 = vmatpush.msra.mxu0 %v158
  %290 = vmatpush.msra.mxu0 %v17
  %291 = vmatpush.msra.mxu0 %v130
  %292 = vmatpush.msra.mxu0 %v102
  %293 = vmatpush.msra.mxu0 %v74
  %294 = vmatpush.msra.mxu0 %v46
  %295 = vmatmul.f32.gmra.mxu0 %v256
  %v296 = vpop.f32.mrf.mxu0
  %v297 = vadd.f32 0.0, %v296
  %298 = vmatmul.f32.gmra.mxu0 %v259
  %v299 = vpop.f32.mrf.mxu0
  %v300 = vadd.f32 0.0, %v299
  %301 = vmatmul.f32.gmra.mxu0 %v262
  %v302 = vpop.f32.mrf.mxu0
  %v303 = vadd.f32 0.0, %v302
  %304 = vmatmul.f32.gmra.mxu0 %v265
  %v305 = vpop.f32.mrf.mxu0
  %v306 = vadd.f32 0.0, %v305
  %307 = vmatmul.f32.gmra.mxu0 %v268
  %v308 = vpop.f32.mrf.mxu0
  %v309 = vadd.f32 0.0, %v308
  %310 = vmatmul.f32.gmra.mxu0 %v271
  %v311 = vpop.f32.mrf.mxu0
  %v312 = vadd.f32 0.0, %v311
  %313 = vmatmul.f32.gmra.mxu0 %v274
  %v314 = vpop.f32.mrf.mxu0
  %v315 = vadd.f32 0.0, %v314
  %316 = vmatmul.f32.gmra.mxu0 %v277
  %v317 = vpop.f32.mrf.mxu0
  %v318 = vadd.f32 0.0, %v317
  %319 = vdwg.mxu0
  %320 = vmatpush.msra.mxu0 0.0
  %321 = vmatpush.msra.mxu0 0.0
  %322 = vmatpush.msra.mxu0 0.0
  %323 = vmatpush.msra.mxu0 0.0
  %324 = vmatpush.msra.mxu0 0.0
  %325 = vmatpush.msra.mxu0 0.0
  %326 = vmatpush.msra.mxu0 0.0
  %327 = vmatpush.msra.mxu0 %v243
  %328 = vmatpush.msra.mxu0 %v215
  %329 = vmatpush.msra.mxu0 %v187
  %330 = vmatpush.msra.mxu0 %v159
  %331 = vmatpush.msra.mxu0 %v18
  %332 = vmatpush.msra.mxu0 %v131
  %333 = vmatpush.msra.mxu0 %v103
  %334 = vmatpush.msra.mxu0 %v75
  %335 = vmatpush.msra.mxu0 %v47
  %336 = vmatmul.f32.gmra.mxu0 %v256
  %v337 = vpop.f32.mrf.mxu0
  %v338 = vadd.f32 0.0, %v337
  %339 = vmatmul.f32.gmra.mxu0 %v259
  %v340 = vpop.f32.mrf.mxu0
  %v341 = vadd.f32 0.0, %v340
  %342 = vmatmul.f32.gmra.mxu0 %v262
  %v343 = vpop.f32.mrf.mxu0
  %v344 = vadd.f32 0.0, %v343
  %345 = vmatmul.f32.gmra.mxu0 %v265
  %v346 = vpop.f32.mrf.mxu0
  %v347 = vadd.f32 0.0, %v346
  %348 = vmatmul.f32.gmra.mxu0 %v268
  %v349 = vpop.f32.mrf.mxu0
  %v350 = vadd.f32 0.0, %v349
  %351 = vmatmul.f32.gmra.mxu0 %v271
  %v352 = vpop.f32.mrf.mxu0
  %v353 = vadd.f32 0.0, %v352
  %354 = vmatmul.f32.gmra.mxu0 %v274
  %v355 = vpop.f32.mrf.mxu0
  %v356 = vadd.f32 0.0, %v355
  %357 = vmatmul.f32.gmra.mxu0 %v277
  %v358 = vpop.f32.mrf.mxu0
  %v359 = vadd.f32 0.0, %v358
  %360 = vdwg.mxu0
  %361 = vmatpush.msra.mxu0 0.0
  %362 = vmatpush.msra.mxu0 0.0
  %363 = vmatpush.msra.mxu0 0.0
  %364 = vmatpush.msra.mxu0 0.0
  %365 = vmatpush.msra.mxu0 0.0
  %366 = vmatpush.msra.mxu0 0.0
  %367 = vmatpush.msra.mxu0 0.0
  %368 = vmatpush.msra.mxu0 %v244
  %369 = vmatpush.msra.mxu0 %v216
  %370 = vmatpush.msra.mxu0 %v188
  %371 = vmatpush.msra.mxu0 %v160
  %372 = vmatpush.msra.mxu0 %v19
  %373 = vmatpush.msra.mxu0 %v132
  %374 = vmatpush.msra.mxu0 %v104
  %375 = vmatpush.msra.mxu0 %v76
  %376 = vmatpush.msra.mxu0 %v48
  %377 = vmatmul.f32.gmra.mxu0 %v256
  %v378 = vpop.f32.mrf.mxu0
  %v379 = vadd.f32 0.0, %v378
  %380 = vmatmul.f32.gmra.mxu0 %v259
  %v381 = vpop.f32.mrf.mxu0
  %v382 = vadd.f32 0.0, %v381
  %383 = vmatmul.f32.gmra.mxu0 %v262
  %v384 = vpop.f32.mrf.mxu0
  %v385 = vadd.f32 0.0, %v384
  %386 = vmatmul.f32.gmra.mxu0 %v265
  %v387 = vpop.f32.mrf.mxu0
  %v388 = vadd.f32 0.0, %v387
  %389 = vmatmul.f32.gmra.mxu0 %v268
  %v390 = vpop.f32.mrf.mxu0
  %v391 = vadd.f32 0.0, %v390
  %392 = vmatmul.f32.gmra.mxu0 %v271
  %v393 = vpop.f32.mrf.mxu0
  %v394 = vadd.f32 0.0, %v393
  %395 = vmatmul.f32.gmra.mxu0 %v274
  %v396 = vpop.f32.mrf.mxu0
  %v397 = vadd.f32 0.0, %v396
  %398 = vmatmul.f32.gmra.mxu0 %v277
  %v399 = vpop.f32.mrf.mxu0
  %v400 = vadd.f32 0.0, %v399
  %401 = vdwg.mxu0
  %402 = vmatpush.msra.mxu0 0.0
  %403 = vmatpush.msra.mxu0 0.0
  %404 = vmatpush.msra.mxu0 0.0
  %405 = vmatpush.msra.mxu0 0.0
  %406 = vmatpush.msra.mxu0 0.0
  %407 = vmatpush.msra.mxu0 0.0
  %408 = vmatpush.msra.mxu0 0.0
  %409 = vmatpush.msra.mxu0 %v245
  %410 = vmatpush.msra.mxu0 %v217
  %411 = vmatpush.msra.mxu0 %v189
  %412 = vmatpush.msra.mxu0 %v161
  %413 = vmatpush.msra.mxu0 %v20
  %414 = vmatpush.msra.mxu0 %v133
  %415 = vmatpush.msra.mxu0 %v105
  %416 = vmatpush.msra.mxu0 %v77
  %417 = vmatpush.msra.mxu0 %v49
  %418 = vmatmul.f32.gmra.mxu0 %v256
  %v419 = vpop.f32.mrf.mxu0
  %v420 = vadd.f32 0.0, %v419
  %421 = vmatmul.f32.gmra.mxu0 %v259
  %v422 = vpop.f32.mrf.mxu0
  %v423 = vadd.f32 0.0, %v422
  %424 = vmatmul.f32.gmra.mxu0 %v262
  %v425 = vpop.f32.mrf.mxu0
  %v426 = vadd.f32 0.0, %v425
  %427 = vmatmul.f32.gmra.mxu0 %v265
  %v428 = vpop.f32.mrf.mxu0
  %v429 = vadd.f32 0.0, %v428
  %430 = vmatmul.f32.gmra.mxu0 %v268
  %v431 = vpop.f32.mrf.mxu0
  %v432 = vadd.f32 0.0, %v431
  %433 = vmatmul.f32.gmra.mxu0 %v271
  %v434 = vpop.f32.mrf.mxu0
  %v435 = vadd.f32 0.0, %v434
  %436 = vmatmul.f32.gmra.mxu0 %v274
  %v437 = vpop.f32.mrf.mxu0
  %v438 = vadd.f32 0.0, %v437
  %439 = vmatmul.f32.gmra.mxu0 %v277
  %v440 = vpop.f32.mrf.mxu0
  %v441 = vadd.f32 0.0, %v440
  %442 = vdwg.mxu0
  %v443 = vmax.f32 %v297, 0.0
  %v444 = vmax.f32 %v338, 0.0
  %v445 = vmax.f32 %v379, 0.0
  %v446 = vmax.f32 %v420, 0.0
  %v447 = vmax.f32 %v300, 0.0
  %v448 = vmax.f32 %v341, 0.0
  %v449 = vmax.f32 %v382, 0.0
  %v450 = vmax.f32 %v423, 0.0
  %v451 = vmax.f32 %v303, 0.0
  %v452 = vmax.f32 %v344, 0.0
  %v453 = vmax.f32 %v385, 0.0
  %v454 = vmax.f32 %v426, 0.0
  %v455 = vmax.f32 %v306, 0.0
  %v456 = vmax.f32 %v347, 0.0
  %v457 = vmax.f32 %v388, 0.0
  %v458 = vmax.f32 %v429, 0.0
  %v459 = vmax.f32 %v309, 0.0
  %v460 = vmax.f32 %v350, 0.0
  %v461 = vmax.f32 %v391, 0.0
  %v462 = vmax.f32 %v432, 0.0
  %v463 = vmax.f32 %v312, 0.0
  %v464 = vmax.f32 %v353, 0.0
  %v465 = vmax.f32 %v394, 0.0
  %v466 = vmax.f32 %v435, 0.0
  %v467 = vmax.f32 %v315, 0.0
  %v468 = vmax.f32 %v356, 0.0
  %v469 = vmax.f32 %v397, 0.0
  %v470 = vmax.f32 %v438, 0.0
  %v471 = vmax.f32 %v318, 0.0
  %v472 = vmax.f32 %v359, 0.0
  %v473 = vmax.f32 %v400, 0.0
  %v474 = vmax.f32 %v441, 0.0
  %s475 = scalar_lea.vmem %s3, 16
  %v476 = vld [vmem:[%s475] sm:$0xf]
  %v477 = vld [vmem:[%s3] sm:$0xf]
  %478 = vrot.lane.b32.xlu0 %v443, 17
  %v479 = vpop.permute.xlu0 %478
  %480 = vrot.lane.b32.xlu0 %v447, 17
  %v481 = vpop.permute.xlu0 %480
  %482 = vrot.lane.b32.xlu0 %v451, 17
  %v483 = vpop.permute.xlu0 %482
  %484 = vrot.lane.b32.xlu0 %v455, 17
  %v485 = vpop.permute.xlu0 %484
  %486 = vrot.lane.b32.xlu0 %v459, 17
  %v487 = vpop.permute.xlu0 %486
  %488 = vrot.lane.b32.xlu0 %v463, 17
  %v489 = vpop.permute.xlu0 %488
  %490 = vrot.lane.b32.xlu0 %v467, 17
  %v491 = vpop.permute.xlu0 %490
  %492 = vrot.lane.b32.xlu0 %v471, 17
  %v493 = vpop.permute.xlu0 %492
  %494 = vrot.lane.b32.xlu0 %v444, 17
  %v495 = vpop.permute.xlu0 %494
  %496 = vrot.lane.b32.xlu0 %v448, 17
  %v497 = vpop.permute.xlu0 %496
  %498 = vrot.lane.b32.xlu0 %v452, 17
  %v499 = vpop.permute.xlu0 %498
  %500 = vrot.lane.b32.xlu0 %v456, 17
  %v501 = vpop.permute.xlu0 %500
  %502 = vrot.lane.b32.xlu0 %v460, 17
  %v503 = vpop.permute.xlu0 %502
  %504 = vrot.lane.b32.xlu0 %v464, 17
  %v505 = vpop.permute.xlu0 %504
  %506 = vrot.lane.b32.xlu0 %v468, 17
  %v507 = vpop.permute.xlu0 %506
  %508 = vrot.lane.b32.xlu0 %v472, 17
  %v509 = vpop.permute.xlu0 %508
  %510 = vrot.lane.b32.xlu0 %v445, 17
  %v511 = vpop.permute.xlu0 %510
  %512 = vrot.lane.b32.xlu0 %v449, 17
  %v513 = vpop.permute.xlu0 %512
  %514 = vrot.lane.b32.xlu0 %v453, 17
  %v515 = vpop.permute.xlu0 %514
  %516 = vrot.lane.b32.xlu0 %v457, 17
  %v517 = vpop.permute.xlu0 %516
  %518 = vrot.lane.b32.xlu0 %v461, 17
  %v519 = vpop.permute.xlu0 %518
  %520 = vrot.lane.b32.xlu0 %v465, 17
  %v521 = vpop.permute.xlu0 %520
  %522 = vrot.lane.b32.xlu0 %v469, 17
  %v523 = vpop.permute.xlu0 %522
  %524 = vrot.lane.b32.xlu0 %v473, 17
  %v525 = vpop.permute.xlu0 %524
  %526 = vrot.lane.b32.xlu0 %v446, 17
  %v527 = vpop.permute.xlu0 %526
  %528 = vrot.lane.b32.xlu0 %v450, 17
  %v529 = vpop.permute.xlu0 %528
  %530 = vrot.lane.b32.xlu0 %v454, 17
  %v531 = vpop.permute.xlu0 %530
  %532 = vrot.lane.b32.xlu0 %v458, 17
  %v533 = vpop.permute.xlu0 %532
  %534 = vrot.lane.b32.xlu0 %v462, 17
  %v535 = vpop.permute.xlu0 %534
  %536 = vrot.lane.b32.xlu0 %v466, 17
  %v537 = vpop.permute.xlu0 %536
  %538 = vrot.lane.b32.xlu0 %v470, 17
  %v539 = vpop.permute.xlu0 %538
  %540 = vrot.lane.b32.xlu0 %v474, 17
  %v541 = vpop.permute.xlu0 %540
  %v542 = vsel %vm31, %v511, %v527
  %v543 = vsel %vm31, %v513, %v529
  %v544 = vsel %vm31, %v515, %v531
  %v545 = vsel %vm31, %v517, %v533
  %v546 = vsel %vm31, %v519, %v535
  %v547 = vsel %vm31, %v521, %v537
  %v548 = vsel %vm31, %v523, %v539
  %v549 = vsel %vm31, %v525, %v541
  %v550 = vsel %vm31, %v495, %v511
  %v551 = vsel %vm31, %v497, %v513
  %v552 = vsel %vm31, %v499, %v515
  %v553 = vsel %vm31, %v501, %v517
  %v554 = vsel %vm31, %v503, %v519
  %v555 = vsel %vm31, %v505, %v521
  %v556 = vsel %vm31, %v507, %v523
  %v557 = vsel %vm31, %v509, %v525
  %v558 = vsel %vm31, %v479, %v495
  %v559 = vsel %vm31, %v481, %v497
  %v560 = vsel %vm31, %v483, %v499
  %v561 = vsel %vm31, %v485, %v501
  %v562 = vsel %vm31, %v487, %v503
  %v563 = vsel %vm31, %v489, %v505
  %v564 = vsel %vm31, %v491, %v507
  %v565 = vsel %vm31, %v493, %v509
  %v566 = vsel %vm31, %v527, %v479
  %v567 = vsel %vm31, %v529, %v481
  %v568 = vsel %vm31, %v531, %v483
  %v569 = vsel %vm31, %v533, %v485
  %v570 = vsel %vm31, %v535, %v487
  %v571 = vsel %vm31, %v537, %v489
  %v572 = vsel %vm31, %v539, %v491
  %v573 = vsel %vm31, %v541, %v493
  %v574 = vmul.f32 %v566, %v38
  %v575 = vmul.f32 %v558, %v39
  %v576 = vmul.f32 %v550, %v40
  %v577 = vmul.f32 %v542, %v41
  %v578 = vmul.f32 %v567, %v38
  %v579 = vmul.f32 %v559, %v39
  %v580 = vmul.f32 %v551, %v40
  %v581 = vmul.f32 %v543, %v41
  %v582 = vmul.f32 %v568, %v38
  %v583 = vmul.f32 %v560, %v39
  %v584 = vmul.f32 %v552, %v40
  %v585 = vmul.f32 %v544, %v41
  %v586 = vmul.f32 %v569, %v38
  %v587 = vmul.f32 %v561, %v39
  %v588 = vmul.f32 %v553, %v40
  %v589 = vmul.f32 %v545, %v41
  %v590 = vmul.f32 %v570, %v38
  %v591 = vmul.f32 %v562, %v39
  %v592 = vmul.f32 %v554, %v40
  %v593 = vmul.f32 %v546, %v41
  %v594 = vmul.f32 %v571, %v38
  %v595 = vmul.f32 %v563, %v39
  %v596 = vmul.f32 %v555, %v40
  %v597 = vmul.f32 %v547, %v41
  %v598 = vmul.f32 %v572, %v38
  %v599 = vmul.f32 %v564, %v39
  %v600 = vmul.f32 %v556, %v40
  %v601 = vmul.f32 %v548, %v41
  %v602 = vmul.f32 %v573, %v38
  %v603 = vmul.f32 %v565, %v39
  %v604 = vmul.f32 %v557, %v40
  %v605 = vmul.f32 %v549, %v41
  %vm606 = vcmask 523264
  %v608 = vsel %vm606, %v477, 0
  %610 = vmatpush.msra.mxu0 0.0
  %611 = vmatpush.msra.mxu0 0.0
  %612 = vmatpush.msra.mxu0 0.0
  %613 = vmatpush.msra.mxu0 0.0
  %614 = vmatpush.msra.mxu0 0.0
  %615 = vmatpush.msra.mxu0 0.0
  %616 = vmatpush.msra.mxu0 0.0
  %617 = vmatpush.msra.mxu0 0.0
  %618 = vmatpush.msra.mxu0 %v602
  %619 = vmatpush.msra.mxu0 %v598
  %620 = vmatpush.msra.mxu0 %v594
  %621 = vmatpush.msra.mxu0 %v590
  %622 = vmatpush.msra.mxu0 %v586
  %623 = vmatpush.msra.mxu0 %v582
  %624 = vmatpush.msra.mxu0 %v578
  %625 = vmatpush.msra.mxu0 %v574
  %626 = vmatmul.f32.gmra.mxu0 %v608
  %v627 = vpop.f32.mrf.mxu0
  %v628 = vadd.f32 0.0, %v627
  %629 = vdwg.mxu0
  %630 = vmatpush.msra.mxu0 0.0
  %631 = vmatpush.msra.mxu0 0.0
  %632 = vmatpush.msra.mxu0 0.0
  %633 = vmatpush.msra.mxu0 0.0
  %634 = vmatpush.msra.mxu0 0.0
  %635 = vmatpush.msra.mxu0 0.0
  %636 = vmatpush.msra.mxu0 0.0
  %637 = vmatpush.msra.mxu0 0.0
  %638 = vmatpush.msra.mxu0 %v603
  %639 = vmatpush.msra.mxu0 %v599
  %640 = vmatpush.msra.mxu0 %v595
  %641 = vmatpush.msra.mxu0 %v591
  %642 = vmatpush.msra.mxu0 %v587
  %643 = vmatpush.msra.mxu0 %v583
  %644 = vmatpush.msra.mxu0 %v579
  %645 = vmatpush.msra.mxu0 %v575
  %646 = vmatmul.f32.gmra.mxu0 %v608
  %v647 = vpop.f32.mrf.mxu0
  %v648 = vadd.f32 0.0, %v647
  %649 = vdwg.mxu0
  %650 = vmatpush.msra.mxu0 0.0
  %651 = vmatpush.msra.mxu0 0.0
  %652 = vmatpush.msra.mxu0 0.0
  %653 = vmatpush.msra.mxu0 0.0
  %654 = vmatpush.msra.mxu0 0.0
  %655 = vmatpush.msra.mxu0 0.0
  %656 = vmatpush.msra.mxu0 0.0
  %657 = vmatpush.msra.mxu0 0.0
  %658 = vmatpush.msra.mxu0 %v604
  %659 = vmatpush.msra.mxu0 %v600
  %660 = vmatpush.msra.mxu0 %v596
  %661 = vmatpush.msra.mxu0 %v592
  %662 = vmatpush.msra.mxu0 %v588
  %663 = vmatpush.msra.mxu0 %v584
  %664 = vmatpush.msra.mxu0 %v580
  %665 = vmatpush.msra.mxu0 %v576
  %666 = vmatmul.f32.gmra.mxu0 %v608
  %v667 = vpop.f32.mrf.mxu0
  %v668 = vadd.f32 0.0, %v667
  %669 = vdwg.mxu0
  %670 = vmatpush.msra.mxu0 0.0
  %671 = vmatpush.msra.mxu0 0.0
  %672 = vmatpush.msra.mxu0 0.0
  %673 = vmatpush.msra.mxu0 0.0
  %674 = vmatpush.msra.mxu0 0.0
  %675 = vmatpush.msra.mxu0 0.0
  %676 = vmatpush.msra.mxu0 0.0
  %677 = vmatpush.msra.mxu0 0.0
  %678 = vmatpush.msra.mxu0 %v605
  %679 = vmatpush.msra.mxu0 %v601
  %680 = vmatpush.msra.mxu0 %v597
  %681 = vmatpush.msra.mxu0 %v593
  %682 = vmatpush.msra.mxu0 %v589
  %683 = vmatpush.msra.mxu0 %v585
  %684 = vmatpush.msra.mxu0 %v581
  %685 = vmatpush.msra.mxu0 %v577
  %686 = vmatmul.f32.gmra.mxu0 %v608
  %v687 = vpop.f32.mrf.mxu0
  %v688 = vadd.f32 0.0, %v687
  %689 = vdwg.mxu0
  %v691 = vsel %vm606, %v476, 0
  %693 = vmatpush.msra.mxu0 0.0
  %694 = vmatpush.msra.mxu0 0.0
  %695 = vmatpush.msra.mxu0 0.0
  %696 = vmatpush.msra.mxu0 0.0
  %697 = vmatpush.msra.mxu0 0.0
  %698 = vmatpush.msra.mxu0 0.0
  %699 = vmatpush.msra.mxu0 0.0
  %700 = vmatpush.msra.mxu0 0.0
  %701 = vmatpush.msra.mxu0 %v471
  %702 = vmatpush.msra.mxu0 %v467
  %703 = vmatpush.msra.mxu0 %v463
  %704 = vmatpush.msra.mxu0 %v459
  %705 = vmatpush.msra.mxu0 %v455
  %706 = vmatpush.msra.mxu0 %v451
  %707 = vmatpush.msra.mxu0 %v447
  %708 = vmatpush.msra.mxu0 %v443
  %709 = vmatmul.f32.gmra.mxu0 %v691
  %v710 = vpop.f32.mrf.mxu0
  %v711 = vadd.f32 %v628, %v710
  %712 = vdwg.mxu0
  %713 = vmatpush.msra.mxu0 0.0
  %714 = vmatpush.msra.mxu0 0.0
  %715 = vmatpush.msra.mxu0 0.0
  %716 = vmatpush.msra.mxu0 0.0
  %717 = vmatpush.msra.mxu0 0.0
  %718 = vmatpush.msra.mxu0 0.0
  %719 = vmatpush.msra.mxu0 0.0
  %720 = vmatpush.msra.mxu0 0.0
  %721 = vmatpush.msra.mxu0 %v472
  %722 = vmatpush.msra.mxu0 %v468
  %723 = vmatpush.msra.mxu0 %v464
  %724 = vmatpush.msra.mxu0 %v460
  %725 = vmatpush.msra.mxu0 %v456
  %726 = vmatpush.msra.mxu0 %v452
  %727 = vmatpush.msra.mxu0 %v448
  %728 = vmatpush.msra.mxu0 %v444
  %729 = vmatmul.f32.gmra.mxu0 %v691
  %v730 = vpop.f32.mrf.mxu0
  %v731 = vadd.f32 %v648, %v730
  %732 = vdwg.mxu0
  %733 = vmatpush.msra.mxu0 0.0
  %734 = vmatpush.msra.mxu0 0.0
  %735 = vmatpush.msra.mxu0 0.0
  %736 = vmatpush.msra.mxu0 0.0
  %737 = vmatpush.msra.mxu0 0.0
  %738 = vmatpush.msra.mxu0 0.0
  %739 = vmatpush.msra.mxu0 0.0
  %740 = vmatpush.msra.mxu0 0.0
  %741 = vmatpush.msra.mxu0 %v473
  %742 = vmatpush.msra.mxu0 %v469
  %743 = vmatpush.msra.mxu0 %v465
  %744 = vmatpush.msra.mxu0 %v461
  %745 = vmatpush.msra.mxu0 %v457
  %746 = vmatpush.msra.mxu0 %v453
  %747 = vmatpush.msra.mxu0 %v449
  %748 = vmatpush.msra.mxu0 %v445
  %749 = vmatmul.f32.gmra.mxu0 %v691
  %v750 = vpop.f32.mrf.mxu0
  %v751 = vadd.f32 %v668, %v750
  %752 = vdwg.mxu0
  %753 = vmatpush.msra.mxu0 0.0
  %754 = vmatpush.msra.mxu0 0.0
  %755 = vmatpush.msra.mxu0 0.0
  %756 = vmatpush.msra.mxu0 0.0
  %757 = vmatpush.msra.mxu0 0.0
  %758 = vmatpush.msra.mxu0 0.0
  %759 = vmatpush.msra.mxu0 0.0
  %760 = vmatpush.msra.mxu0 0.0
  %761 = vmatpush.msra.mxu0 %v474
  %762 = vmatpush.msra.mxu0 %v470
  %763 = vmatpush.msra.mxu0 %v466
  %764 = vmatpush.msra.mxu0 %v462
  %765 = vmatpush.msra.mxu0 %v458
  %766 = vmatpush.msra.mxu0 %v454
  %767 = vmatpush.msra.mxu0 %v450
  %768 = vmatpush.msra.mxu0 %v446
  %769 = vmatmul.f32.gmra.mxu0 %v691
  %v770 = vpop.f32.mrf.mxu0
  %v771 = vadd.f32 %v688, %v770
  %772 = vdwg.mxu0
  %s773 = scalar_lea.vmem %s3, 4
  %v774 = vld [vmem:[%s773] sm:$0xf]
  %775 = vrot.lane.b32.xlu0 %v443, 16
  %v776 = vpop.permute.xlu0 %775
  %777 = vrot.lane.b32.xlu0 %v447, 16
  %v778 = vpop.permute.xlu0 %777
  %779 = vrot.lane.b32.xlu0 %v451, 16
  %v780 = vpop.permute.xlu0 %779
  %781 = vrot.lane.b32.xlu0 %v455, 16
  %v782 = vpop.permute.xlu0 %781
  %783 = vrot.lane.b32.xlu0 %v459, 16
  %v784 = vpop.permute.xlu0 %783
  %785 = vrot.lane.b32.xlu0 %v463, 16
  %v786 = vpop.permute.xlu0 %785
  %787 = vrot.lane.b32.xlu0 %v467, 16
  %v788 = vpop.permute.xlu0 %787
  %789 = vrot.lane.b32.xlu0 %v471, 16
  %v790 = vpop.permute.xlu0 %789
  %791 = vrot.lane.b32.xlu0 %v444, 16
  %v792 = vpop.permute.xlu0 %791
  %793 = vrot.lane.b32.xlu0 %v448, 16
  %v794 = vpop.permute.xlu0 %793
  %795 = vrot.lane.b32.xlu0 %v452, 16
  %v796 = vpop.permute.xlu0 %795
  %797 = vrot.lane.b32.xlu0 %v456, 16
  %v798 = vpop.permute.xlu0 %797
  %799 = vrot.lane.b32.xlu0 %v460, 16
  %v800 = vpop.permute.xlu0 %799
  %801 = vrot.lane.b32.xlu0 %v464, 16
  %v802 = vpop.permute.xlu0 %801
  %803 = vrot.lane.b32.xlu0 %v468, 16
  %v804 = vpop.permute.xlu0 %803
  %805 = vrot.lane.b32.xlu0 %v472, 16
  %v806 = vpop.permute.xlu0 %805
  %807 = vrot.lane.b32.xlu0 %v445, 16
  %v808 = vpop.permute.xlu0 %807
  %809 = vrot.lane.b32.xlu0 %v449, 16
  %v810 = vpop.permute.xlu0 %809
  %811 = vrot.lane.b32.xlu0 %v453, 16
  %v812 = vpop.permute.xlu0 %811
  %813 = vrot.lane.b32.xlu0 %v457, 16
  %v814 = vpop.permute.xlu0 %813
  %815 = vrot.lane.b32.xlu0 %v461, 16
  %v816 = vpop.permute.xlu0 %815
  %817 = vrot.lane.b32.xlu0 %v465, 16
  %v818 = vpop.permute.xlu0 %817
  %819 = vrot.lane.b32.xlu0 %v469, 16
  %v820 = vpop.permute.xlu0 %819
  %821 = vrot.lane.b32.xlu0 %v473, 16
  %v822 = vpop.permute.xlu0 %821
  %823 = vrot.lane.b32.xlu0 %v446, 16
  %v824 = vpop.permute.xlu0 %823
  %825 = vrot.lane.b32.xlu0 %v450, 16
  %v826 = vpop.permute.xlu0 %825
  %827 = vrot.lane.b32.xlu0 %v454, 16
  %v828 = vpop.permute.xlu0 %827
  %829 = vrot.lane.b32.xlu0 %v458, 16
  %v830 = vpop.permute.xlu0 %829
  %831 = vrot.lane.b32.xlu0 %v462, 16
  %v832 = vpop.permute.xlu0 %831
  %833 = vrot.lane.b32.xlu0 %v466, 16
  %v834 = vpop.permute.xlu0 %833
  %835 = vrot.lane.b32.xlu0 %v470, 16
  %v836 = vpop.permute.xlu0 %835
  %837 = vrot.lane.b32.xlu0 %v474, 16
  %v838 = vpop.permute.xlu0 %837
  %v839 = vsel %vm58, %v808, %v824
  %v840 = vsel %vm58, %v810, %v826
  %v841 = vsel %vm58, %v812, %v828
  %v842 = vsel %vm58, %v814, %v830
  %v843 = vsel %vm58, %v816, %v832
  %v844 = vsel %vm58, %v818, %v834
  %v845 = vsel %vm58, %v820, %v836
  %v846 = vsel %vm58, %v822, %v838
  %v847 = vsel %vm58, %v792, %v808
  %v848 = vsel %vm58, %v794, %v810
  %v849 = vsel %vm58, %v796, %v812
  %v850 = vsel %vm58, %v798, %v814
  %v851 = vsel %vm58, %v800, %v816
  %v852 = vsel %vm58, %v802, %v818
  %v853 = vsel %vm58, %v804, %v820
  %v854 = vsel %vm58, %v806, %v822
  %v855 = vsel %vm58, %v776, %v792
  %v856 = vsel %vm58, %v778, %v794
  %v857 = vsel %vm58, %v780, %v796
  %v858 = vsel %vm58, %v782, %v798
  %v859 = vsel %vm58, %v784, %v800
  %v860 = vsel %vm58, %v786, %v802
  %v861 = vsel %vm58, %v788, %v804
  %v862 = vsel %vm58, %v790, %v806
  %v863 = vsel %vm58, %v824, %v776
  %v864 = vsel %vm58, %v826, %v778
  %v865 = vsel %vm58, %v828, %v780
  %v866 = vsel %vm58, %v830, %v782
  %v867 = vsel %vm58, %v832, %v784
  %v868 = vsel %vm58, %v834, %v786
  %v869 = vsel %vm58, %v836, %v788
  %v870 = vsel %vm58, %v838, %v790
  %v871 = vmul.f32 %v863, %v66
  %v872 = vmul.f32 %v855, %v67
  %v873 = vmul.f32 %v847, %v68
  %v874 = vmul.f32 %v839, %v69
  %v875 = vmul.f32 %v864, %v66
  %v876 = vmul.f32 %v856, %v67
  %v877 = vmul.f32 %v848, %v68
  %v878 = vmul.f32 %v840, %v69
  %v879 = vmul.f32 %v865, %v66
  %v880 = vmul.f32 %v857, %v67
  %v881 = vmul.f32 %v849, %v68
  %v882 = vmul.f32 %v841, %v69
  %v883 = vmul.f32 %v866, %v66
  %v884 = vmul.f32 %v858, %v67
  %v885 = vmul.f32 %v850, %v68
  %v886 = vmul.f32 %v842, %v69
  %v887 = vmul.f32 %v867, %v66
  %v888 = vmul.f32 %v859, %v67
  %v889 = vmul.f32 %v851, %v68
  %v890 = vmul.f32 %v843, %v69
  %v891 = vmul.f32 %v868, %v66
  %v892 = vmul.f32 %v860, %v67
  %v893 = vmul.f32 %v852, %v68
  %v894 = vmul.f32 %v844, %v69
  %v895 = vmul.f32 %v869, %v66
  %v896 = vmul.f32 %v861, %v67
  %v897 = vmul.f32 %v853, %v68
  %v898 = vmul.f32 %v845, %v69
  %v899 = vmul.f32 %v870, %v66
  %v900 = vmul.f32 %v862, %v67
  %v901 = vmul.f32 %v854, %v68
  %v902 = vmul.f32 %v846, %v69
  %v904 = vsel %vm606, %v774, 0
  %906 = vmatpush.msra.mxu0 0.0
  %907 = vmatpush.msra.mxu0 0.0
  %908 = vmatpush.msra.mxu0 0.0
  %909 = vmatpush.msra.mxu0 0.0
  %910 = vmatpush.msra.mxu0 0.0
  %911 = vmatpush.msra.mxu0 0.0
  %912 = vmatpush.msra.mxu0 0.0
  %913 = vmatpush.msra.mxu0 0.0
  %914 = vmatpush.msra.mxu0 %v899
  %915 = vmatpush.msra.mxu0 %v895
  %916 = vmatpush.msra.mxu0 %v891
  %917 = vmatpush.msra.mxu0 %v887
  %918 = vmatpush.msra.mxu0 %v883
  %919 = vmatpush.msra.mxu0 %v879
  %920 = vmatpush.msra.mxu0 %v875
  %921 = vmatpush.msra.mxu0 %v871
  %922 = vmatmul.f32.gmra.mxu0 %v904
  %v923 = vpop.f32.mrf.mxu0
  %v924 = vadd.f32 0.0, %v923
  %925 = vdwg.mxu0
  %926 = vmatpush.msra.mxu0 0.0
  %927 = vmatpush.msra.mxu0 0.0
  %928 = vmatpush.msra.mxu0 0.0
  %929 = vmatpush.msra.mxu0 0.0
  %930 = vmatpush.msra.mxu0 0.0
  %931 = vmatpush.msra.mxu0 0.0
  %932 = vmatpush.msra.mxu0 0.0
  %933 = vmatpush.msra.mxu0 0.0
  %934 = vmatpush.msra.mxu0 %v900
  %935 = vmatpush.msra.mxu0 %v896
  %936 = vmatpush.msra.mxu0 %v892
  %937 = vmatpush.msra.mxu0 %v888
  %938 = vmatpush.msra.mxu0 %v884
  %939 = vmatpush.msra.mxu0 %v880
  %940 = vmatpush.msra.mxu0 %v876
  %941 = vmatpush.msra.mxu0 %v872
  %942 = vmatmul.f32.gmra.mxu0 %v904
  %v943 = vpop.f32.mrf.mxu0
  %v944 = vadd.f32 0.0, %v943
  %945 = vdwg.mxu0
  %946 = vmatpush.msra.mxu0 0.0
  %947 = vmatpush.msra.mxu0 0.0
  %948 = vmatpush.msra.mxu0 0.0
  %949 = vmatpush.msra.mxu0 0.0
  %950 = vmatpush.msra.mxu0 0.0
  %951 = vmatpush.msra.mxu0 0.0
  %952 = vmatpush.msra.mxu0 0.0
  %953 = vmatpush.msra.mxu0 0.0
  %954 = vmatpush.msra.mxu0 %v901
  %955 = vmatpush.msra.mxu0 %v897
  %956 = vmatpush.msra.mxu0 %v893
  %957 = vmatpush.msra.mxu0 %v889
  %958 = vmatpush.msra.mxu0 %v885
  %959 = vmatpush.msra.mxu0 %v881
  %960 = vmatpush.msra.mxu0 %v877
  %961 = vmatpush.msra.mxu0 %v873
  %962 = vmatmul.f32.gmra.mxu0 %v904
  %v963 = vpop.f32.mrf.mxu0
  %v964 = vadd.f32 0.0, %v963
  %965 = vdwg.mxu0
  %966 = vmatpush.msra.mxu0 0.0
  %967 = vmatpush.msra.mxu0 0.0
  %968 = vmatpush.msra.mxu0 0.0
  %969 = vmatpush.msra.mxu0 0.0
  %970 = vmatpush.msra.mxu0 0.0
  %971 = vmatpush.msra.mxu0 0.0
  %972 = vmatpush.msra.mxu0 0.0
  %973 = vmatpush.msra.mxu0 0.0
  %974 = vmatpush.msra.mxu0 %v902
  %975 = vmatpush.msra.mxu0 %v898
  %976 = vmatpush.msra.mxu0 %v894
  %977 = vmatpush.msra.mxu0 %v890
  %978 = vmatpush.msra.mxu0 %v886
  %979 = vmatpush.msra.mxu0 %v882
  %980 = vmatpush.msra.mxu0 %v878
  %981 = vmatpush.msra.mxu0 %v874
  %982 = vmatmul.f32.gmra.mxu0 %v904
  %v983 = vpop.f32.mrf.mxu0
  %v984 = vadd.f32 0.0, %v983
  %985 = vdwg.mxu0
  %v986 = vadd.f32 %v711, %v924
  %v987 = vadd.f32 %v731, %v944
  %v988 = vadd.f32 %v751, %v964
  %v989 = vadd.f32 %v771, %v984
  %s990 = scalar_lea.vmem %s3, 8
  %v991 = vld [vmem:[%s990] sm:$0xf]
  %992 = vrot.lane.b32.xlu0 %v443, 15
  %v993 = vpop.permute.xlu0 %992
  %994 = vrot.lane.b32.xlu0 %v447, 15
  %v995 = vpop.permute.xlu0 %994
  %996 = vrot.lane.b32.xlu0 %v451, 15
  %v997 = vpop.permute.xlu0 %996
  %998 = vrot.lane.b32.xlu0 %v455, 15
  %v999 = vpop.permute.xlu0 %998
  %1000 = vrot.lane.b32.xlu0 %v459, 15
  %v1001 = vpop.permute.xlu0 %1000
  %1002 = vrot.lane.b32.xlu0 %v463, 15
  %v1003 = vpop.permute.xlu0 %1002
  %1004 = vrot.lane.b32.xlu0 %v467, 15
  %v1005 = vpop.permute.xlu0 %1004
  %1006 = vrot.lane.b32.xlu0 %v471, 15
  %v1007 = vpop.permute.xlu0 %1006
  %1008 = vrot.lane.b32.xlu0 %v444, 15
  %v1009 = vpop.permute.xlu0 %1008
  %1010 = vrot.lane.b32.xlu0 %v448, 15
  %v1011 = vpop.permute.xlu0 %1010
  %1012 = vrot.lane.b32.xlu0 %v452, 15
  %v1013 = vpop.permute.xlu0 %1012
  %1014 = vrot.lane.b32.xlu0 %v456, 15
  %v1015 = vpop.permute.xlu0 %1014
  %1016 = vrot.lane.b32.xlu0 %v460, 15
  %v1017 = vpop.permute.xlu0 %1016
  %1018 = vrot.lane.b32.xlu0 %v464, 15
  %v1019 = vpop.permute.xlu0 %1018
  %1020 = vrot.lane.b32.xlu0 %v468, 15
  %v1021 = vpop.permute.xlu0 %1020
  %1022 = vrot.lane.b32.xlu0 %v472, 15
  %v1023 = vpop.permute.xlu0 %1022
  %1024 = vrot.lane.b32.xlu0 %v445, 15
  %v1025 = vpop.permute.xlu0 %1024
  %1026 = vrot.lane.b32.xlu0 %v449, 15
  %v1027 = vpop.permute.xlu0 %1026
  %1028 = vrot.lane.b32.xlu0 %v453, 15
  %v1029 = vpop.permute.xlu0 %1028
  %1030 = vrot.lane.b32.xlu0 %v457, 15
  %v1031 = vpop.permute.xlu0 %1030
  %1032 = vrot.lane.b32.xlu0 %v461, 15
  %v1033 = vpop.permute.xlu0 %1032
  %1034 = vrot.lane.b32.xlu0 %v465, 15
  %v1035 = vpop.permute.xlu0 %1034
  %1036 = vrot.lane.b32.xlu0 %v469, 15
  %v1037 = vpop.permute.xlu0 %1036
  %1038 = vrot.lane.b32.xlu0 %v473, 15
  %v1039 = vpop.permute.xlu0 %1038
  %1040 = vrot.lane.b32.xlu0 %v446, 15
  %v1041 = vpop.permute.xlu0 %1040
  %1042 = vrot.lane.b32.xlu0 %v450, 15
  %v1043 = vpop.permute.xlu0 %1042
  %1044 = vrot.lane.b32.xlu0 %v454, 15
  %v1045 = vpop.permute.xlu0 %1044
  %1046 = vrot.lane.b32.xlu0 %v458, 15
  %v1047 = vpop.permute.xlu0 %1046
  %1048 = vrot.lane.b32.xlu0 %v462, 15
  %v1049 = vpop.permute.xlu0 %1048
  %1050 = vrot.lane.b32.xlu0 %v466, 15
  %v1051 = vpop.permute.xlu0 %1050
  %1052 = vrot.lane.b32.xlu0 %v470, 15
  %v1053 = vpop.permute.xlu0 %1052
  %1054 = vrot.lane.b32.xlu0 %v474, 15
  %v1055 = vpop.permute.xlu0 %1054
  %v1056 = vsel %vm86, %v1025, %v1041
  %v1057 = vsel %vm86, %v1027, %v1043
  %v1058 = vsel %vm86, %v1029, %v1045
  %v1059 = vsel %vm86, %v1031, %v1047
  %v1060 = vsel %vm86, %v1033, %v1049
  %v1061 = vsel %vm86, %v1035, %v1051
  %v1062 = vsel %vm86, %v1037, %v1053
  %v1063 = vsel %vm86, %v1039, %v1055
  %v1064 = vsel %vm86, %v1009, %v1025
  %v1065 = vsel %vm86, %v1011, %v1027
  %v1066 = vsel %vm86, %v1013, %v1029
  %v1067 = vsel %vm86, %v1015, %v1031
  %v1068 = vsel %vm86, %v1017, %v1033
  %v1069 = vsel %vm86, %v1019, %v1035
  %v1070 = vsel %vm86, %v1021, %v1037
  %v1071 = vsel %vm86, %v1023, %v1039
  %v1072 = vsel %vm86, %v993, %v1009
  %v1073 = vsel %vm86, %v995, %v1011
  %v1074 = vsel %vm86, %v997, %v1013
  %v1075 = vsel %vm86, %v999, %v1015
  %v1076 = vsel %vm86, %v1001, %v1017
  %v1077 = vsel %vm86, %v1003, %v1019
  %v1078 = vsel %vm86, %v1005, %v1021
  %v1079 = vsel %vm86, %v1007, %v1023
  %v1080 = vsel %vm86, %v1041, %v993
  %v1081 = vsel %vm86, %v1043, %v995
  %v1082 = vsel %vm86, %v1045, %v997
  %v1083 = vsel %vm86, %v1047, %v999
  %v1084 = vsel %vm86, %v1049, %v1001
  %v1085 = vsel %vm86, %v1051, %v1003
  %v1086 = vsel %vm86, %v1053, %v1005
  %v1087 = vsel %vm86, %v1055, %v1007
  %v1088 = vmul.f32 %v1080, %v94
  %v1089 = vmul.f32 %v1072, %v95
  %v1090 = vmul.f32 %v1064, %v96
  %v1091 = vmul.f32 %v1056, %v97
  %v1092 = vmul.f32 %v1081, %v94
  %v1093 = vmul.f32 %v1073, %v95
  %v1094 = vmul.f32 %v1065, %v96
  %v1095 = vmul.f32 %v1057, %v97
  %v1096 = vmul.f32 %v1082, %v94
  %v1097 = vmul.f32 %v1074, %v95
  %v1098 = vmul.f32 %v1066, %v96
  %v1099 = vmul.f32 %v1058, %v97
  %v1100 = vmul.f32 %v1083, %v94
  %v1101 = vmul.f32 %v1075, %v95
  %v1102 = vmul.f32 %v1067, %v96
  %v1103 = vmul.f32 %v1059, %v97
  %v1104 = vmul.f32 %v1084, %v94
  %v1105 = vmul.f32 %v1076, %v95
  %v1106 = vmul.f32 %v1068, %v96
  %v1107 = vmul.f32 %v1060, %v97
  %v1108 = vmul.f32 %v1085, %v94
  %v1109 = vmul.f32 %v1077, %v95
  %v1110 = vmul.f32 %v1069, %v96
  %v1111 = vmul.f32 %v1061, %v97
  %v1112 = vmul.f32 %v1086, %v94
  %v1113 = vmul.f32 %v1078, %v95
  %v1114 = vmul.f32 %v1070, %v96
  %v1115 = vmul.f32 %v1062, %v97
  %v1116 = vmul.f32 %v1087, %v94
  %v1117 = vmul.f32 %v1079, %v95
  %v1118 = vmul.f32 %v1071, %v96
  %v1119 = vmul.f32 %v1063, %v97
  %v1121 = vsel %vm606, %v991, 0
  %1123 = vmatpush.msra.mxu0 0.0
  %1124 = vmatpush.msra.mxu0 0.0
  %1125 = vmatpush.msra.mxu0 0.0
  %1126 = vmatpush.msra.mxu0 0.0
  %1127 = vmatpush.msra.mxu0 0.0
  %1128 = vmatpush.msra.mxu0 0.0
  %1129 = vmatpush.msra.mxu0 0.0
  %1130 = vmatpush.msra.mxu0 0.0
  %1131 = vmatpush.msra.mxu0 %v1116
  %1132 = vmatpush.msra.mxu0 %v1112
  %1133 = vmatpush.msra.mxu0 %v1108
  %1134 = vmatpush.msra.mxu0 %v1104
  %1135 = vmatpush.msra.mxu0 %v1100
  %1136 = vmatpush.msra.mxu0 %v1096
  %1137 = vmatpush.msra.mxu0 %v1092
  %1138 = vmatpush.msra.mxu0 %v1088
  %1139 = vmatmul.f32.gmra.mxu0 %v1121
  %v1140 = vpop.f32.mrf.mxu0
  %v1141 = vadd.f32 0.0, %v1140
  %1142 = vdwg.mxu0
  %1143 = vmatpush.msra.mxu0 0.0
  %1144 = vmatpush.msra.mxu0 0.0
  %1145 = vmatpush.msra.mxu0 0.0
  %1146 = vmatpush.msra.mxu0 0.0
  %1147 = vmatpush.msra.mxu0 0.0
  %1148 = vmatpush.msra.mxu0 0.0
  %1149 = vmatpush.msra.mxu0 0.0
  %1150 = vmatpush.msra.mxu0 0.0
  %1151 = vmatpush.msra.mxu0 %v1117
  %1152 = vmatpush.msra.mxu0 %v1113
  %1153 = vmatpush.msra.mxu0 %v1109
  %1154 = vmatpush.msra.mxu0 %v1105
  %1155 = vmatpush.msra.mxu0 %v1101
  %1156 = vmatpush.msra.mxu0 %v1097
  %1157 = vmatpush.msra.mxu0 %v1093
  %1158 = vmatpush.msra.mxu0 %v1089
  %1159 = vmatmul.f32.gmra.mxu0 %v1121
  %v1160 = vpop.f32.mrf.mxu0
  %v1161 = vadd.f32 0.0, %v1160
  %1162 = vdwg.mxu0
  %1163 = vmatpush.msra.mxu0 0.0
  %1164 = vmatpush.msra.mxu0 0.0
  %1165 = vmatpush.msra.mxu0 0.0
  %1166 = vmatpush.msra.mxu0 0.0
  %1167 = vmatpush.msra.mxu0 0.0
  %1168 = vmatpush.msra.mxu0 0.0
  %1169 = vmatpush.msra.mxu0 0.0
  %1170 = vmatpush.msra.mxu0 0.0
  %1171 = vmatpush.msra.mxu0 %v1118
  %1172 = vmatpush.msra.mxu0 %v1114
  %1173 = vmatpush.msra.mxu0 %v1110
  %1174 = vmatpush.msra.mxu0 %v1106
  %1175 = vmatpush.msra.mxu0 %v1102
  %1176 = vmatpush.msra.mxu0 %v1098
  %1177 = vmatpush.msra.mxu0 %v1094
  %1178 = vmatpush.msra.mxu0 %v1090
  %1179 = vmatmul.f32.gmra.mxu0 %v1121
  %v1180 = vpop.f32.mrf.mxu0
  %v1181 = vadd.f32 0.0, %v1180
  %1182 = vdwg.mxu0
  %1183 = vmatpush.msra.mxu0 0.0
  %1184 = vmatpush.msra.mxu0 0.0
  %1185 = vmatpush.msra.mxu0 0.0
  %1186 = vmatpush.msra.mxu0 0.0
  %1187 = vmatpush.msra.mxu0 0.0
  %1188 = vmatpush.msra.mxu0 0.0
  %1189 = vmatpush.msra.mxu0 0.0
  %1190 = vmatpush.msra.mxu0 0.0
  %1191 = vmatpush.msra.mxu0 %v1119
  %1192 = vmatpush.msra.mxu0 %v1115
  %1193 = vmatpush.msra.mxu0 %v1111
  %1194 = vmatpush.msra.mxu0 %v1107
  %1195 = vmatpush.msra.mxu0 %v1103
  %1196 = vmatpush.msra.mxu0 %v1099
  %1197 = vmatpush.msra.mxu0 %v1095
  %1198 = vmatpush.msra.mxu0 %v1091
  %1199 = vmatmul.f32.gmra.mxu0 %v1121
  %v1200 = vpop.f32.mrf.mxu0
  %v1201 = vadd.f32 0.0, %v1200
  %1202 = vdwg.mxu0
  %v1203 = vadd.f32 %v986, %v1141
  %v1204 = vadd.f32 %v987, %v1161
  %v1205 = vadd.f32 %v988, %v1181
  %v1206 = vadd.f32 %v989, %v1201
  %s1207 = scalar_lea.vmem %s3, 12
  %v1208 = vld [vmem:[%s1207] sm:$0xf]
  %1209 = vrot.lane.b32.xlu0 %v443, 1
  %v1210 = vpop.permute.xlu0 %1209
  %1211 = vrot.lane.b32.xlu0 %v447, 1
  %v1212 = vpop.permute.xlu0 %1211
  %1213 = vrot.lane.b32.xlu0 %v451, 1
  %v1214 = vpop.permute.xlu0 %1213
  %1215 = vrot.lane.b32.xlu0 %v455, 1
  %v1216 = vpop.permute.xlu0 %1215
  %1217 = vrot.lane.b32.xlu0 %v459, 1
  %v1218 = vpop.permute.xlu0 %1217
  %1219 = vrot.lane.b32.xlu0 %v463, 1
  %v1220 = vpop.permute.xlu0 %1219
  %1221 = vrot.lane.b32.xlu0 %v467, 1
  %v1222 = vpop.permute.xlu0 %1221
  %1223 = vrot.lane.b32.xlu0 %v471, 1
  %v1224 = vpop.permute.xlu0 %1223
  %1225 = vrot.lane.b32.xlu0 %v444, 1
  %v1226 = vpop.permute.xlu0 %1225
  %1227 = vrot.lane.b32.xlu0 %v448, 1
  %v1228 = vpop.permute.xlu0 %1227
  %1229 = vrot.lane.b32.xlu0 %v452, 1
  %v1230 = vpop.permute.xlu0 %1229
  %1231 = vrot.lane.b32.xlu0 %v456, 1
  %v1232 = vpop.permute.xlu0 %1231
  %1233 = vrot.lane.b32.xlu0 %v460, 1
  %v1234 = vpop.permute.xlu0 %1233
  %1235 = vrot.lane.b32.xlu0 %v464, 1
  %v1236 = vpop.permute.xlu0 %1235
  %1237 = vrot.lane.b32.xlu0 %v468, 1
  %v1238 = vpop.permute.xlu0 %1237
  %1239 = vrot.lane.b32.xlu0 %v472, 1
  %v1240 = vpop.permute.xlu0 %1239
  %1241 = vrot.lane.b32.xlu0 %v445, 1
  %v1242 = vpop.permute.xlu0 %1241
  %1243 = vrot.lane.b32.xlu0 %v449, 1
  %v1244 = vpop.permute.xlu0 %1243
  %1245 = vrot.lane.b32.xlu0 %v453, 1
  %v1246 = vpop.permute.xlu0 %1245
  %1247 = vrot.lane.b32.xlu0 %v457, 1
  %v1248 = vpop.permute.xlu0 %1247
  %1249 = vrot.lane.b32.xlu0 %v461, 1
  %v1250 = vpop.permute.xlu0 %1249
  %1251 = vrot.lane.b32.xlu0 %v465, 1
  %v1252 = vpop.permute.xlu0 %1251
  %1253 = vrot.lane.b32.xlu0 %v469, 1
  %v1254 = vpop.permute.xlu0 %1253
  %1255 = vrot.lane.b32.xlu0 %v473, 1
  %v1256 = vpop.permute.xlu0 %1255
  %1257 = vrot.lane.b32.xlu0 %v446, 1
  %v1258 = vpop.permute.xlu0 %1257
  %1259 = vrot.lane.b32.xlu0 %v450, 1
  %v1260 = vpop.permute.xlu0 %1259
  %1261 = vrot.lane.b32.xlu0 %v454, 1
  %v1262 = vpop.permute.xlu0 %1261
  %1263 = vrot.lane.b32.xlu0 %v458, 1
  %v1264 = vpop.permute.xlu0 %1263
  %1265 = vrot.lane.b32.xlu0 %v462, 1
  %v1266 = vpop.permute.xlu0 %1265
  %1267 = vrot.lane.b32.xlu0 %v466, 1
  %v1268 = vpop.permute.xlu0 %1267
  %1269 = vrot.lane.b32.xlu0 %v470, 1
  %v1270 = vpop.permute.xlu0 %1269
  %1271 = vrot.lane.b32.xlu0 %v474, 1
  %v1272 = vpop.permute.xlu0 %1271
  %v1273 = vsel %vm114, %v1242, %v1258
  %v1274 = vsel %vm114, %v1244, %v1260
  %v1275 = vsel %vm114, %v1246, %v1262
  %v1276 = vsel %vm114, %v1248, %v1264
  %v1277 = vsel %vm114, %v1250, %v1266
  %v1278 = vsel %vm114, %v1252, %v1268
  %v1279 = vsel %vm114, %v1254, %v1270
  %v1280 = vsel %vm114, %v1256, %v1272
  %v1281 = vsel %vm114, %v1226, %v1242
  %v1282 = vsel %vm114, %v1228, %v1244
  %v1283 = vsel %vm114, %v1230, %v1246
  %v1284 = vsel %vm114, %v1232, %v1248
  %v1285 = vsel %vm114, %v1234, %v1250
  %v1286 = vsel %vm114, %v1236, %v1252
  %v1287 = vsel %vm114, %v1238, %v1254
  %v1288 = vsel %vm114, %v1240, %v1256
  %v1289 = vsel %vm114, %v1210, %v1226
  %v1290 = vsel %vm114, %v1212, %v1228
  %v1291 = vsel %vm114, %v1214, %v1230
  %v1292 = vsel %vm114, %v1216, %v1232
  %v1293 = vsel %vm114, %v1218, %v1234
  %v1294 = vsel %vm114, %v1220, %v1236
  %v1295 = vsel %vm114, %v1222, %v1238
  %v1296 = vsel %vm114, %v1224, %v1240
  %v1297 = vsel %vm114, %v1258, %v1210
  %v1298 = vsel %vm114, %v1260, %v1212
  %v1299 = vsel %vm114, %v1262, %v1214
  %v1300 = vsel %vm114, %v1264, %v1216
  %v1301 = vsel %vm114, %v1266, %v1218
  %v1302 = vsel %vm114, %v1268, %v1220
  %v1303 = vsel %vm114, %v1270, %v1222
  %v1304 = vsel %vm114, %v1272, %v1224
  %v1305 = vmul.f32 %v1297, %v122
  %v1306 = vmul.f32 %v1289, %v123
  %v1307 = vmul.f32 %v1281, %v124
  %v1308 = vmul.f32 %v1273, %v125
  %v1309 = vmul.f32 %v1298, %v122
  %v1310 = vmul.f32 %v1290, %v123
  %v1311 = vmul.f32 %v1282, %v124
  %v1312 = vmul.f32 %v1274, %v125
  %v1313 = vmul.f32 %v1299, %v122
  %v1314 = vmul.f32 %v1291, %v123
  %v1315 = vmul.f32 %v1283, %v124
  %v1316 = vmul.f32 %v1275, %v125
  %v1317 = vmul.f32 %v1300, %v122
  %v1318 = vmul.f32 %v1292, %v123
  %v1319 = vmul.f32 %v1284, %v124
  %v1320 = vmul.f32 %v1276, %v125
  %v1321 = vmul.f32 %v1301, %v122
  %v1322 = vmul.f32 %v1293, %v123
  %v1323 = vmul.f32 %v1285, %v124
  %v1324 = vmul.f32 %v1277, %v125
  %v1325 = vmul.f32 %v1302, %v122
  %v1326 = vmul.f32 %v1294, %v123
  %v1327 = vmul.f32 %v1286, %v124
  %v1328 = vmul.f32 %v1278, %v125
  %v1329 = vmul.f32 %v1303, %v122
  %v1330 = vmul.f32 %v1295, %v123
  %v1331 = vmul.f32 %v1287, %v124
  %v1332 = vmul.f32 %v1279, %v125
  %v1333 = vmul.f32 %v1304, %v122
  %v1334 = vmul.f32 %v1296, %v123
  %v1335 = vmul.f32 %v1288, %v124
  %v1336 = vmul.f32 %v1280, %v125
  %v1338 = vsel %vm606, %v1208, 0
  %1340 = vmatpush.msra.mxu0 0.0
  %1341 = vmatpush.msra.mxu0 0.0
  %1342 = vmatpush.msra.mxu0 0.0
  %1343 = vmatpush.msra.mxu0 0.0
  %1344 = vmatpush.msra.mxu0 0.0
  %1345 = vmatpush.msra.mxu0 0.0
  %1346 = vmatpush.msra.mxu0 0.0
  %1347 = vmatpush.msra.mxu0 0.0
  %1348 = vmatpush.msra.mxu0 %v1333
  %1349 = vmatpush.msra.mxu0 %v1329
  %1350 = vmatpush.msra.mxu0 %v1325
  %1351 = vmatpush.msra.mxu0 %v1321
  %1352 = vmatpush.msra.mxu0 %v1317
  %1353 = vmatpush.msra.mxu0 %v1313
  %1354 = vmatpush.msra.mxu0 %v1309
  %1355 = vmatpush.msra.mxu0 %v1305
  %1356 = vmatmul.f32.gmra.mxu0 %v1338
  %v1357 = vpop.f32.mrf.mxu0
  %v1358 = vadd.f32 0.0, %v1357
  %1359 = vdwg.mxu0
  %1360 = vmatpush.msra.mxu0 0.0
  %1361 = vmatpush.msra.mxu0 0.0
  %1362 = vmatpush.msra.mxu0 0.0
  %1363 = vmatpush.msra.mxu0 0.0
  %1364 = vmatpush.msra.mxu0 0.0
  %1365 = vmatpush.msra.mxu0 0.0
  %1366 = vmatpush.msra.mxu0 0.0
  %1367 = vmatpush.msra.mxu0 0.0
  %1368 = vmatpush.msra.mxu0 %v1334
  %1369 = vmatpush.msra.mxu0 %v1330
  %1370 = vmatpush.msra.mxu0 %v1326
  %1371 = vmatpush.msra.mxu0 %v1322
  %1372 = vmatpush.msra.mxu0 %v1318
  %1373 = vmatpush.msra.mxu0 %v1314
  %1374 = vmatpush.msra.mxu0 %v1310
  %1375 = vmatpush.msra.mxu0 %v1306
  %1376 = vmatmul.f32.gmra.mxu0 %v1338
  %v1377 = vpop.f32.mrf.mxu0
  %v1378 = vadd.f32 0.0, %v1377
  %1379 = vdwg.mxu0
  %1380 = vmatpush.msra.mxu0 0.0
  %1381 = vmatpush.msra.mxu0 0.0
  %1382 = vmatpush.msra.mxu0 0.0
  %1383 = vmatpush.msra.mxu0 0.0
  %1384 = vmatpush.msra.mxu0 0.0
  %1385 = vmatpush.msra.mxu0 0.0
  %1386 = vmatpush.msra.mxu0 0.0
  %1387 = vmatpush.msra.mxu0 0.0
  %1388 = vmatpush.msra.mxu0 %v1335
  %1389 = vmatpush.msra.mxu0 %v1331
  %1390 = vmatpush.msra.mxu0 %v1327
  %1391 = vmatpush.msra.mxu0 %v1323
  %1392 = vmatpush.msra.mxu0 %v1319
  %1393 = vmatpush.msra.mxu0 %v1315
  %1394 = vmatpush.msra.mxu0 %v1311
  %1395 = vmatpush.msra.mxu0 %v1307
  %1396 = vmatmul.f32.gmra.mxu0 %v1338
  %v1397 = vpop.f32.mrf.mxu0
  %v1398 = vadd.f32 0.0, %v1397
  %1399 = vdwg.mxu0
  %1400 = vmatpush.msra.mxu0 0.0
  %1401 = vmatpush.msra.mxu0 0.0
  %1402 = vmatpush.msra.mxu0 0.0
  %1403 = vmatpush.msra.mxu0 0.0
  %1404 = vmatpush.msra.mxu0 0.0
  %1405 = vmatpush.msra.mxu0 0.0
  %1406 = vmatpush.msra.mxu0 0.0
  %1407 = vmatpush.msra.mxu0 0.0
  %1408 = vmatpush.msra.mxu0 %v1336
  %1409 = vmatpush.msra.mxu0 %v1332
  %1410 = vmatpush.msra.mxu0 %v1328
  %1411 = vmatpush.msra.mxu0 %v1324
  %1412 = vmatpush.msra.mxu0 %v1320
  %1413 = vmatpush.msra.mxu0 %v1316
  %1414 = vmatpush.msra.mxu0 %v1312
  %1415 = vmatpush.msra.mxu0 %v1308
  %1416 = vmatmul.f32.gmra.mxu0 %v1338
  %v1417 = vpop.f32.mrf.mxu0
  %v1418 = vadd.f32 0.0, %v1417
  %1419 = vdwg.mxu0
  %v1420 = vadd.f32 %v1203, %v1358
  %v1421 = vadd.f32 %v1204, %v1378
  %v1422 = vadd.f32 %v1205, %v1398
  %v1423 = vadd.f32 %v1206, %v1418
  %s1424 = scalar_lea.vmem %s3, 20
  %v1425 = vld [vmem:[%s1424] sm:$0xf]
  %1426 = vrot.lane.b32.xlu0 %v443, 127
  %v1427 = vpop.permute.xlu0 %1426
  %1428 = vrot.lane.b32.xlu0 %v447, 127
  %v1429 = vpop.permute.xlu0 %1428
  %1430 = vrot.lane.b32.xlu0 %v451, 127
  %v1431 = vpop.permute.xlu0 %1430
  %1432 = vrot.lane.b32.xlu0 %v455, 127
  %v1433 = vpop.permute.xlu0 %1432
  %1434 = vrot.lane.b32.xlu0 %v459, 127
  %v1435 = vpop.permute.xlu0 %1434
  %1436 = vrot.lane.b32.xlu0 %v463, 127
  %v1437 = vpop.permute.xlu0 %1436
  %1438 = vrot.lane.b32.xlu0 %v467, 127
  %v1439 = vpop.permute.xlu0 %1438
  %1440 = vrot.lane.b32.xlu0 %v471, 127
  %v1441 = vpop.permute.xlu0 %1440
  %1442 = vrot.lane.b32.xlu0 %v444, 127
  %v1443 = vpop.permute.xlu0 %1442
  %1444 = vrot.lane.b32.xlu0 %v448, 127
  %v1445 = vpop.permute.xlu0 %1444
  %1446 = vrot.lane.b32.xlu0 %v452, 127
  %v1447 = vpop.permute.xlu0 %1446
  %1448 = vrot.lane.b32.xlu0 %v456, 127
  %v1449 = vpop.permute.xlu0 %1448
  %1450 = vrot.lane.b32.xlu0 %v460, 127
  %v1451 = vpop.permute.xlu0 %1450
  %1452 = vrot.lane.b32.xlu0 %v464, 127
  %v1453 = vpop.permute.xlu0 %1452
  %1454 = vrot.lane.b32.xlu0 %v468, 127
  %v1455 = vpop.permute.xlu0 %1454
  %1456 = vrot.lane.b32.xlu0 %v472, 127
  %v1457 = vpop.permute.xlu0 %1456
  %1458 = vrot.lane.b32.xlu0 %v445, 127
  %v1459 = vpop.permute.xlu0 %1458
  %1460 = vrot.lane.b32.xlu0 %v449, 127
  %v1461 = vpop.permute.xlu0 %1460
  %1462 = vrot.lane.b32.xlu0 %v453, 127
  %v1463 = vpop.permute.xlu0 %1462
  %1464 = vrot.lane.b32.xlu0 %v457, 127
  %v1465 = vpop.permute.xlu0 %1464
  %1466 = vrot.lane.b32.xlu0 %v461, 127
  %v1467 = vpop.permute.xlu0 %1466
  %1468 = vrot.lane.b32.xlu0 %v465, 127
  %v1469 = vpop.permute.xlu0 %1468
  %1470 = vrot.lane.b32.xlu0 %v469, 127
  %v1471 = vpop.permute.xlu0 %1470
  %1472 = vrot.lane.b32.xlu0 %v473, 127
  %v1473 = vpop.permute.xlu0 %1472
  %1474 = vrot.lane.b32.xlu0 %v446, 127
  %v1475 = vpop.permute.xlu0 %1474
  %1476 = vrot.lane.b32.xlu0 %v450, 127
  %v1477 = vpop.permute.xlu0 %1476
  %1478 = vrot.lane.b32.xlu0 %v454, 127
  %v1479 = vpop.permute.xlu0 %1478
  %1480 = vrot.lane.b32.xlu0 %v458, 127
  %v1481 = vpop.permute.xlu0 %1480
  %1482 = vrot.lane.b32.xlu0 %v462, 127
  %v1483 = vpop.permute.xlu0 %1482
  %1484 = vrot.lane.b32.xlu0 %v466, 127
  %v1485 = vpop.permute.xlu0 %1484
  %1486 = vrot.lane.b32.xlu0 %v470, 127
  %v1487 = vpop.permute.xlu0 %1486
  %1488 = vrot.lane.b32.xlu0 %v474, 127
  %v1489 = vpop.permute.xlu0 %1488
  %v1490 = vsel %vm142, %v1459, %v1475
  %v1491 = vsel %vm142, %v1461, %v1477
  %v1492 = vsel %vm142, %v1463, %v1479
  %v1493 = vsel %vm142, %v1465, %v1481
  %v1494 = vsel %vm142, %v1467, %v1483
  %v1495 = vsel %vm142, %v1469, %v1485
  %v1496 = vsel %vm142, %v1471, %v1487
  %v1497 = vsel %vm142, %v1473, %v1489
  %v1498 = vsel %vm142, %v1443, %v1459
  %v1499 = vsel %vm142, %v1445, %v1461
  %v1500 = vsel %vm142, %v1447, %v1463
  %v1501 = vsel %vm142, %v1449, %v1465
  %v1502 = vsel %vm142, %v1451, %v1467
  %v1503 = vsel %vm142, %v1453, %v1469
  %v1504 = vsel %vm142, %v1455, %v1471
  %v1505 = vsel %vm142, %v1457, %v1473
  %v1506 = vsel %vm142, %v1427, %v1443
  %v1507 = vsel %vm142, %v1429, %v1445
  %v1508 = vsel %vm142, %v1431, %v1447
  %v1509 = vsel %vm142, %v1433, %v1449
  %v1510 = vsel %vm142, %v1435, %v1451
  %v1511 = vsel %vm142, %v1437, %v1453
  %v1512 = vsel %vm142, %v1439, %v1455
  %v1513 = vsel %vm142, %v1441, %v1457
  %v1514 = vsel %vm142, %v1475, %v1427
  %v1515 = vsel %vm142, %v1477, %v1429
  %v1516 = vsel %vm142, %v1479, %v1431
  %v1517 = vsel %vm142, %v1481, %v1433
  %v1518 = vsel %vm142, %v1483, %v1435
  %v1519 = vsel %vm142, %v1485, %v1437
  %v1520 = vsel %vm142, %v1487, %v1439
  %v1521 = vsel %vm142, %v1489, %v1441
  %v1522 = vmul.f32 %v1506, %v150
  %v1523 = vmul.f32 %v1498, %v151
  %v1524 = vmul.f32 %v1490, %v152
  %v1525 = vmul.f32 %v1514, %v153
  %v1526 = vmul.f32 %v1507, %v150
  %v1527 = vmul.f32 %v1499, %v151
  %v1528 = vmul.f32 %v1491, %v152
  %v1529 = vmul.f32 %v1515, %v153
  %v1530 = vmul.f32 %v1508, %v150
  %v1531 = vmul.f32 %v1500, %v151
  %v1532 = vmul.f32 %v1492, %v152
  %v1533 = vmul.f32 %v1516, %v153
  %v1534 = vmul.f32 %v1509, %v150
  %v1535 = vmul.f32 %v1501, %v151
  %v1536 = vmul.f32 %v1493, %v152
  %v1537 = vmul.f32 %v1517, %v153
  %v1538 = vmul.f32 %v1510, %v150
  %v1539 = vmul.f32 %v1502, %v151
  %v1540 = vmul.f32 %v1494, %v152
  %v1541 = vmul.f32 %v1518, %v153
  %v1542 = vmul.f32 %v1511, %v150
  %v1543 = vmul.f32 %v1503, %v151
  %v1544 = vmul.f32 %v1495, %v152
  %v1545 = vmul.f32 %v1519, %v153
  %v1546 = vmul.f32 %v1512, %v150
  %v1547 = vmul.f32 %v1504, %v151
  %v1548 = vmul.f32 %v1496, %v152
  %v1549 = vmul.f32 %v1520, %v153
  %v1550 = vmul.f32 %v1513, %v150
  %v1551 = vmul.f32 %v1505, %v151
  %v1552 = vmul.f32 %v1497, %v152
  %v1553 = vmul.f32 %v1521, %v153
  %v1555 = vsel %vm606, %v1425, 0
  %1557 = vmatpush.msra.mxu0 0.0
  %1558 = vmatpush.msra.mxu0 0.0
  %1559 = vmatpush.msra.mxu0 0.0
  %1560 = vmatpush.msra.mxu0 0.0
  %1561 = vmatpush.msra.mxu0 0.0
  %1562 = vmatpush.msra.mxu0 0.0
  %1563 = vmatpush.msra.mxu0 0.0
  %1564 = vmatpush.msra.mxu0 0.0
  %1565 = vmatpush.msra.mxu0 %v1550
  %1566 = vmatpush.msra.mxu0 %v1546
  %1567 = vmatpush.msra.mxu0 %v1542
  %1568 = vmatpush.msra.mxu0 %v1538
  %1569 = vmatpush.msra.mxu0 %v1534
  %1570 = vmatpush.msra.mxu0 %v1530
  %1571 = vmatpush.msra.mxu0 %v1526
  %1572 = vmatpush.msra.mxu0 %v1522
  %1573 = vmatmul.f32.gmra.mxu0 %v1555
  %v1574 = vpop.f32.mrf.mxu0
  %v1575 = vadd.f32 0.0, %v1574
  %1576 = vdwg.mxu0
  %1577 = vmatpush.msra.mxu0 0.0
  %1578 = vmatpush.msra.mxu0 0.0
  %1579 = vmatpush.msra.mxu0 0.0
  %1580 = vmatpush.msra.mxu0 0.0
  %1581 = vmatpush.msra.mxu0 0.0
  %1582 = vmatpush.msra.mxu0 0.0
  %1583 = vmatpush.msra.mxu0 0.0
  %1584 = vmatpush.msra.mxu0 0.0
  %1585 = vmatpush.msra.mxu0 %v1551
  %1586 = vmatpush.msra.mxu0 %v1547
  %1587 = vmatpush.msra.mxu0 %v1543
  %1588 = vmatpush.msra.mxu0 %v1539
  %1589 = vmatpush.msra.mxu0 %v1535
  %1590 = vmatpush.msra.mxu0 %v1531
  %1591 = vmatpush.msra.mxu0 %v1527
  %1592 = vmatpush.msra.mxu0 %v1523
  %1593 = vmatmul.f32.gmra.mxu0 %v1555
  %v1594 = vpop.f32.mrf.mxu0
  %v1595 = vadd.f32 0.0, %v1594
  %1596 = vdwg.mxu0
  %1597 = vmatpush.msra.mxu0 0.0
  %1598 = vmatpush.msra.mxu0 0.0
  %1599 = vmatpush.msra.mxu0 0.0
  %1600 = vmatpush.msra.mxu0 0.0
  %1601 = vmatpush.msra.mxu0 0.0
  %1602 = vmatpush.msra.mxu0 0.0
  %1603 = vmatpush.msra.mxu0 0.0
  %1604 = vmatpush.msra.mxu0 0.0
  %1605 = vmatpush.msra.mxu0 %v1552
  %1606 = vmatpush.msra.mxu0 %v1548
  %1607 = vmatpush.msra.mxu0 %v1544
  %1608 = vmatpush.msra.mxu0 %v1540
  %1609 = vmatpush.msra.mxu0 %v1536
  %1610 = vmatpush.msra.mxu0 %v1532
  %1611 = vmatpush.msra.mxu0 %v1528
  %1612 = vmatpush.msra.mxu0 %v1524
  %1613 = vmatmul.f32.gmra.mxu0 %v1555
  %v1614 = vpop.f32.mrf.mxu0
  %v1615 = vadd.f32 0.0, %v1614
  %1616 = vdwg.mxu0
  %1617 = vmatpush.msra.mxu0 0.0
  %1618 = vmatpush.msra.mxu0 0.0
  %1619 = vmatpush.msra.mxu0 0.0
  %1620 = vmatpush.msra.mxu0 0.0
  %1621 = vmatpush.msra.mxu0 0.0
  %1622 = vmatpush.msra.mxu0 0.0
  %1623 = vmatpush.msra.mxu0 0.0
  %1624 = vmatpush.msra.mxu0 0.0
  %1625 = vmatpush.msra.mxu0 %v1553
  %1626 = vmatpush.msra.mxu0 %v1549
  %1627 = vmatpush.msra.mxu0 %v1545
  %1628 = vmatpush.msra.mxu0 %v1541
  %1629 = vmatpush.msra.mxu0 %v1537
  %1630 = vmatpush.msra.mxu0 %v1533
  %1631 = vmatpush.msra.mxu0 %v1529
  %1632 = vmatpush.msra.mxu0 %v1525
  %1633 = vmatmul.f32.gmra.mxu0 %v1555
  %v1634 = vpop.f32.mrf.mxu0
  %v1635 = vadd.f32 0.0, %v1634
  %1636 = vdwg.mxu0
  %v1637 = vadd.f32 %v1420, %v1575
  %v1638 = vadd.f32 %v1421, %v1595
  %v1639 = vadd.f32 %v1422, %v1615
  %v1640 = vadd.f32 %v1423, %v1635
  %s1641 = scalar_lea.vmem %s3, 24
  %v1642 = vld [vmem:[%s1641] sm:$0xf]
  %1643 = vrot.lane.b32.xlu0 %v443, 113
  %v1644 = vpop.permute.xlu0 %1643
  %1645 = vrot.lane.b32.xlu0 %v447, 113
  %v1646 = vpop.permute.xlu0 %1645
  %1647 = vrot.lane.b32.xlu0 %v451, 113
  %v1648 = vpop.permute.xlu0 %1647
  %1649 = vrot.lane.b32.xlu0 %v455, 113
  %v1650 = vpop.permute.xlu0 %1649
  %1651 = vrot.lane.b32.xlu0 %v459, 113
  %v1652 = vpop.permute.xlu0 %1651
  %1653 = vrot.lane.b32.xlu0 %v463, 113
  %v1654 = vpop.permute.xlu0 %1653
  %1655 = vrot.lane.b32.xlu0 %v467, 113
  %v1656 = vpop.permute.xlu0 %1655
  %1657 = vrot.lane.b32.xlu0 %v471, 113
  %v1658 = vpop.permute.xlu0 %1657
  %1659 = vrot.lane.b32.xlu0 %v444, 113
  %v1660 = vpop.permute.xlu0 %1659
  %1661 = vrot.lane.b32.xlu0 %v448, 113
  %v1662 = vpop.permute.xlu0 %1661
  %1663 = vrot.lane.b32.xlu0 %v452, 113
  %v1664 = vpop.permute.xlu0 %1663
  %1665 = vrot.lane.b32.xlu0 %v456, 113
  %v1666 = vpop.permute.xlu0 %1665
  %1667 = vrot.lane.b32.xlu0 %v460, 113
  %v1668 = vpop.permute.xlu0 %1667
  %1669 = vrot.lane.b32.xlu0 %v464, 113
  %v1670 = vpop.permute.xlu0 %1669
  %1671 = vrot.lane.b32.xlu0 %v468, 113
  %v1672 = vpop.permute.xlu0 %1671
  %1673 = vrot.lane.b32.xlu0 %v472, 113
  %v1674 = vpop.permute.xlu0 %1673
  %1675 = vrot.lane.b32.xlu0 %v445, 113
  %v1676 = vpop.permute.xlu0 %1675
  %1677 = vrot.lane.b32.xlu0 %v449, 113
  %v1678 = vpop.permute.xlu0 %1677
  %1679 = vrot.lane.b32.xlu0 %v453, 113
  %v1680 = vpop.permute.xlu0 %1679
  %1681 = vrot.lane.b32.xlu0 %v457, 113
  %v1682 = vpop.permute.xlu0 %1681
  %1683 = vrot.lane.b32.xlu0 %v461, 113
  %v1684 = vpop.permute.xlu0 %1683
  %1685 = vrot.lane.b32.xlu0 %v465, 113
  %v1686 = vpop.permute.xlu0 %1685
  %1687 = vrot.lane.b32.xlu0 %v469, 113
  %v1688 = vpop.permute.xlu0 %1687
  %1689 = vrot.lane.b32.xlu0 %v473, 113
  %v1690 = vpop.permute.xlu0 %1689
  %1691 = vrot.lane.b32.xlu0 %v446, 113
  %v1692 = vpop.permute.xlu0 %1691
  %1693 = vrot.lane.b32.xlu0 %v450, 113
  %v1694 = vpop.permute.xlu0 %1693
  %1695 = vrot.lane.b32.xlu0 %v454, 113
  %v1696 = vpop.permute.xlu0 %1695
  %1697 = vrot.lane.b32.xlu0 %v458, 113
  %v1698 = vpop.permute.xlu0 %1697
  %1699 = vrot.lane.b32.xlu0 %v462, 113
  %v1700 = vpop.permute.xlu0 %1699
  %1701 = vrot.lane.b32.xlu0 %v466, 113
  %v1702 = vpop.permute.xlu0 %1701
  %1703 = vrot.lane.b32.xlu0 %v470, 113
  %v1704 = vpop.permute.xlu0 %1703
  %1705 = vrot.lane.b32.xlu0 %v474, 113
  %v1706 = vpop.permute.xlu0 %1705
  %v1707 = vsel %vm170, %v1676, %v1692
  %v1708 = vsel %vm170, %v1678, %v1694
  %v1709 = vsel %vm170, %v1680, %v1696
  %v1710 = vsel %vm170, %v1682, %v1698
  %v1711 = vsel %vm170, %v1684, %v1700
  %v1712 = vsel %vm170, %v1686, %v1702
  %v1713 = vsel %vm170, %v1688, %v1704
  %v1714 = vsel %vm170, %v1690, %v1706
  %v1715 = vsel %vm170, %v1660, %v1676
  %v1716 = vsel %vm170, %v1662, %v1678
  %v1717 = vsel %vm170, %v1664, %v1680
  %v1718 = vsel %vm170, %v1666, %v1682
  %v1719 = vsel %vm170, %v1668, %v1684
  %v1720 = vsel %vm170, %v1670, %v1686
  %v1721 = vsel %vm170, %v1672, %v1688
  %v1722 = vsel %vm170, %v1674, %v1690
  %v1723 = vsel %vm170, %v1644, %v1660
  %v1724 = vsel %vm170, %v1646, %v1662
  %v1725 = vsel %vm170, %v1648, %v1664
  %v1726 = vsel %vm170, %v1650, %v1666
  %v1727 = vsel %vm170, %v1652, %v1668
  %v1728 = vsel %vm170, %v1654, %v1670
  %v1729 = vsel %vm170, %v1656, %v1672
  %v1730 = vsel %vm170, %v1658, %v1674
  %v1731 = vsel %vm170, %v1692, %v1644
  %v1732 = vsel %vm170, %v1694, %v1646
  %v1733 = vsel %vm170, %v1696, %v1648
  %v1734 = vsel %vm170, %v1698, %v1650
  %v1735 = vsel %vm170, %v1700, %v1652
  %v1736 = vsel %vm170, %v1702, %v1654
  %v1737 = vsel %vm170, %v1704, %v1656
  %v1738 = vsel %vm170, %v1706, %v1658
  %v1739 = vmul.f32 %v1723, %v178
  %v1740 = vmul.f32 %v1715, %v179
  %v1741 = vmul.f32 %v1707, %v180
  %v1742 = vmul.f32 %v1731, %v181
  %v1743 = vmul.f32 %v1724, %v178
  %v1744 = vmul.f32 %v1716, %v179
  %v1745 = vmul.f32 %v1708, %v180
  %v1746 = vmul.f32 %v1732, %v181
  %v1747 = vmul.f32 %v1725, %v178
  %v1748 = vmul.f32 %v1717, %v179
  %v1749 = vmul.f32 %v1709, %v180
  %v1750 = vmul.f32 %v1733, %v181
  %v1751 = vmul.f32 %v1726, %v178
  %v1752 = vmul.f32 %v1718, %v179
  %v1753 = vmul.f32 %v1710, %v180
  %v1754 = vmul.f32 %v1734, %v181
  %v1755 = vmul.f32 %v1727, %v178
  %v1756 = vmul.f32 %v1719, %v179
  %v1757 = vmul.f32 %v1711, %v180
  %v1758 = vmul.f32 %v1735, %v181
  %v1759 = vmul.f32 %v1728, %v178
  %v1760 = vmul.f32 %v1720, %v179
  %v1761 = vmul.f32 %v1712, %v180
  %v1762 = vmul.f32 %v1736, %v181
  %v1763 = vmul.f32 %v1729, %v178
  %v1764 = vmul.f32 %v1721, %v179
  %v1765 = vmul.f32 %v1713, %v180
  %v1766 = vmul.f32 %v1737, %v181
  %v1767 = vmul.f32 %v1730, %v178
  %v1768 = vmul.f32 %v1722, %v179
  %v1769 = vmul.f32 %v1714, %v180
  %v1770 = vmul.f32 %v1738, %v181
  %v1772 = vsel %vm606, %v1642, 0
  %1774 = vmatpush.msra.mxu0 0.0
  %1775 = vmatpush.msra.mxu0 0.0
  %1776 = vmatpush.msra.mxu0 0.0
  %1777 = vmatpush.msra.mxu0 0.0
  %1778 = vmatpush.msra.mxu0 0.0
  %1779 = vmatpush.msra.mxu0 0.0
  %1780 = vmatpush.msra.mxu0 0.0
  %1781 = vmatpush.msra.mxu0 0.0
  %1782 = vmatpush.msra.mxu0 %v1767
  %1783 = vmatpush.msra.mxu0 %v1763
  %1784 = vmatpush.msra.mxu0 %v1759
  %1785 = vmatpush.msra.mxu0 %v1755
  %1786 = vmatpush.msra.mxu0 %v1751
  %1787 = vmatpush.msra.mxu0 %v1747
  %1788 = vmatpush.msra.mxu0 %v1743
  %1789 = vmatpush.msra.mxu0 %v1739
  %1790 = vmatmul.f32.gmra.mxu0 %v1772
  %v1791 = vpop.f32.mrf.mxu0
  %v1792 = vadd.f32 0.0, %v1791
  %1793 = vdwg.mxu0
  %1794 = vmatpush.msra.mxu0 0.0
  %1795 = vmatpush.msra.mxu0 0.0
  %1796 = vmatpush.msra.mxu0 0.0
  %1797 = vmatpush.msra.mxu0 0.0
  %1798 = vmatpush.msra.mxu0 0.0
  %1799 = vmatpush.msra.mxu0 0.0
  %1800 = vmatpush.msra.mxu0 0.0
  %1801 = vmatpush.msra.mxu0 0.0
  %1802 = vmatpush.msra.mxu0 %v1768
  %1803 = vmatpush.msra.mxu0 %v1764
  %1804 = vmatpush.msra.mxu0 %v1760
  %1805 = vmatpush.msra.mxu0 %v1756
  %1806 = vmatpush.msra.mxu0 %v1752
  %1807 = vmatpush.msra.mxu0 %v1748
  %1808 = vmatpush.msra.mxu0 %v1744
  %1809 = vmatpush.msra.mxu0 %v1740
  %1810 = vmatmul.f32.gmra.mxu0 %v1772
  %v1811 = vpop.f32.mrf.mxu0
  %v1812 = vadd.f32 0.0, %v1811
  %1813 = vdwg.mxu0
  %1814 = vmatpush.msra.mxu0 0.0
  %1815 = vmatpush.msra.mxu0 0.0
  %1816 = vmatpush.msra.mxu0 0.0
  %1817 = vmatpush.msra.mxu0 0.0
  %1818 = vmatpush.msra.mxu0 0.0
  %1819 = vmatpush.msra.mxu0 0.0
  %1820 = vmatpush.msra.mxu0 0.0
  %1821 = vmatpush.msra.mxu0 0.0
  %1822 = vmatpush.msra.mxu0 %v1769
  %1823 = vmatpush.msra.mxu0 %v1765
  %1824 = vmatpush.msra.mxu0 %v1761
  %1825 = vmatpush.msra.mxu0 %v1757
  %1826 = vmatpush.msra.mxu0 %v1753
  %1827 = vmatpush.msra.mxu0 %v1749
  %1828 = vmatpush.msra.mxu0 %v1745
  %1829 = vmatpush.msra.mxu0 %v1741
  %1830 = vmatmul.f32.gmra.mxu0 %v1772
  %v1831 = vpop.f32.mrf.mxu0
  %v1832 = vadd.f32 0.0, %v1831
  %1833 = vdwg.mxu0
  %1834 = vmatpush.msra.mxu0 0.0
  %1835 = vmatpush.msra.mxu0 0.0
  %1836 = vmatpush.msra.mxu0 0.0
  %1837 = vmatpush.msra.mxu0 0.0
  %1838 = vmatpush.msra.mxu0 0.0
  %1839 = vmatpush.msra.mxu0 0.0
  %1840 = vmatpush.msra.mxu0 0.0
  %1841 = vmatpush.msra.mxu0 0.0
  %1842 = vmatpush.msra.mxu0 %v1770
  %1843 = vmatpush.msra.mxu0 %v1766
  %1844 = vmatpush.msra.mxu0 %v1762
  %1845 = vmatpush.msra.mxu0 %v1758
  %1846 = vmatpush.msra.mxu0 %v1754
  %1847 = vmatpush.msra.mxu0 %v1750
  %1848 = vmatpush.msra.mxu0 %v1746
  %1849 = vmatpush.msra.mxu0 %v1742
  %1850 = vmatmul.f32.gmra.mxu0 %v1772
  %v1851 = vpop.f32.mrf.mxu0
  %v1852 = vadd.f32 0.0, %v1851
  %1853 = vdwg.mxu0
  %v1854 = vadd.f32 %v1637, %v1792
  %v1855 = vadd.f32 %v1638, %v1812
  %v1856 = vadd.f32 %v1639, %v1832
  %v1857 = vadd.f32 %v1640, %v1852
  %s1858 = scalar_lea.vmem %s3, 28
  %v1859 = vld [vmem:[%s1858] sm:$0xf]
  %1860 = vrot.lane.b32.xlu0 %v443, 112
  %v1861 = vpop.permute.xlu0 %1860
  %1862 = vrot.lane.b32.xlu0 %v447, 112
  %v1863 = vpop.permute.xlu0 %1862
  %1864 = vrot.lane.b32.xlu0 %v451, 112
  %v1865 = vpop.permute.xlu0 %1864
  %1866 = vrot.lane.b32.xlu0 %v455, 112
  %v1867 = vpop.permute.xlu0 %1866
  %1868 = vrot.lane.b32.xlu0 %v459, 112
  %v1869 = vpop.permute.xlu0 %1868
  %1870 = vrot.lane.b32.xlu0 %v463, 112
  %v1871 = vpop.permute.xlu0 %1870
  %1872 = vrot.lane.b32.xlu0 %v467, 112
  %v1873 = vpop.permute.xlu0 %1872
  %1874 = vrot.lane.b32.xlu0 %v471, 112
  %v1875 = vpop.permute.xlu0 %1874
  %1876 = vrot.lane.b32.xlu0 %v444, 112
  %v1877 = vpop.permute.xlu0 %1876
  %1878 = vrot.lane.b32.xlu0 %v448, 112
  %v1879 = vpop.permute.xlu0 %1878
  %1880 = vrot.lane.b32.xlu0 %v452, 112
  %v1881 = vpop.permute.xlu0 %1880
  %1882 = vrot.lane.b32.xlu0 %v456, 112
  %v1883 = vpop.permute.xlu0 %1882
  %1884 = vrot.lane.b32.xlu0 %v460, 112
  %v1885 = vpop.permute.xlu0 %1884
  %1886 = vrot.lane.b32.xlu0 %v464, 112
  %v1887 = vpop.permute.xlu0 %1886
  %1888 = vrot.lane.b32.xlu0 %v468, 112
  %v1889 = vpop.permute.xlu0 %1888
  %1890 = vrot.lane.b32.xlu0 %v472, 112
  %v1891 = vpop.permute.xlu0 %1890
  %1892 = vrot.lane.b32.xlu0 %v445, 112
  %v1893 = vpop.permute.xlu0 %1892
  %1894 = vrot.lane.b32.xlu0 %v449, 112
  %v1895 = vpop.permute.xlu0 %1894
  %1896 = vrot.lane.b32.xlu0 %v453, 112
  %v1897 = vpop.permute.xlu0 %1896
  %1898 = vrot.lane.b32.xlu0 %v457, 112
  %v1899 = vpop.permute.xlu0 %1898
  %1900 = vrot.lane.b32.xlu0 %v461, 112
  %v1901 = vpop.permute.xlu0 %1900
  %1902 = vrot.lane.b32.xlu0 %v465, 112
  %v1903 = vpop.permute.xlu0 %1902
  %1904 = vrot.lane.b32.xlu0 %v469, 112
  %v1905 = vpop.permute.xlu0 %1904
  %1906 = vrot.lane.b32.xlu0 %v473, 112
  %v1907 = vpop.permute.xlu0 %1906
  %1908 = vrot.lane.b32.xlu0 %v446, 112
  %v1909 = vpop.permute.xlu0 %1908
  %1910 = vrot.lane.b32.xlu0 %v450, 112
  %v1911 = vpop.permute.xlu0 %1910
  %1912 = vrot.lane.b32.xlu0 %v454, 112
  %v1913 = vpop.permute.xlu0 %1912
  %1914 = vrot.lane.b32.xlu0 %v458, 112
  %v1915 = vpop.permute.xlu0 %1914
  %1916 = vrot.lane.b32.xlu0 %v462, 112
  %v1917 = vpop.permute.xlu0 %1916
  %1918 = vrot.lane.b32.xlu0 %v466, 112
  %v1919 = vpop.permute.xlu0 %1918
  %1920 = vrot.lane.b32.xlu0 %v470, 112
  %v1921 = vpop.permute.xlu0 %1920
  %1922 = vrot.lane.b32.xlu0 %v474, 112
  %v1923 = vpop.permute.xlu0 %1922
  %v1924 = vsel %vm198, %v1893, %v1909
  %v1925 = vsel %vm198, %v1895, %v1911
  %v1926 = vsel %vm198, %v1897, %v1913
  %v1927 = vsel %vm198, %v1899, %v1915
  %v1928 = vsel %vm198, %v1901, %v1917
  %v1929 = vsel %vm198, %v1903, %v1919
  %v1930 = vsel %vm198, %v1905, %v1921
  %v1931 = vsel %vm198, %v1907, %v1923
  %v1932 = vsel %vm198, %v1877, %v1893
  %v1933 = vsel %vm198, %v1879, %v1895
  %v1934 = vsel %vm198, %v1881, %v1897
  %v1935 = vsel %vm198, %v1883, %v1899
  %v1936 = vsel %vm198, %v1885, %v1901
  %v1937 = vsel %vm198, %v1887, %v1903
  %v1938 = vsel %vm198, %v1889, %v1905
  %v1939 = vsel %vm198, %v1891, %v1907
  %v1940 = vsel %vm198, %v1861, %v1877
  %v1941 = vsel %vm198, %v1863, %v1879
  %v1942 = vsel %vm198, %v1865, %v1881
  %v1943 = vsel %vm198, %v1867, %v1883
  %v1944 = vsel %vm198, %v1869, %v1885
  %v1945 = vsel %vm198, %v1871, %v1887
  %v1946 = vsel %vm198, %v1873, %v1889
  %v1947 = vsel %vm198, %v1875, %v1891
  %v1948 = vsel %vm198, %v1909, %v1861
  %v1949 = vsel %vm198, %v1911, %v1863
  %v1950 = vsel %vm198, %v1913, %v1865
  %v1951 = vsel %vm198, %v1915, %v1867
  %v1952 = vsel %vm198, %v1917, %v1869
  %v1953 = vsel %vm198, %v1919, %v1871
  %v1954 = vsel %vm198, %v1921, %v1873
  %v1955 = vsel %vm198, %v1923, %v1875
  %v1956 = vmul.f32 %v1940, %v206
  %v1957 = vmul.f32 %v1932, %v207
  %v1958 = vmul.f32 %v1924, %v208
  %v1959 = vmul.f32 %v1948, %v209
  %v1960 = vmul.f32 %v1941, %v206
  %v1961 = vmul.f32 %v1933, %v207
  %v1962 = vmul.f32 %v1925, %v208
  %v1963 = vmul.f32 %v1949, %v209
  %v1964 = vmul.f32 %v1942, %v206
  %v1965 = vmul.f32 %v1934, %v207
  %v1966 = vmul.f32 %v1926, %v208
  %v1967 = vmul.f32 %v1950, %v209
  %v1968 = vmul.f32 %v1943, %v206
  %v1969 = vmul.f32 %v1935, %v207
  %v1970 = vmul.f32 %v1927, %v208
  %v1971 = vmul.f32 %v1951, %v209
  %v1972 = vmul.f32 %v1944, %v206
  %v1973 = vmul.f32 %v1936, %v207
  %v1974 = vmul.f32 %v1928, %v208
  %v1975 = vmul.f32 %v1952, %v209
  %v1976 = vmul.f32 %v1945, %v206
  %v1977 = vmul.f32 %v1937, %v207
  %v1978 = vmul.f32 %v1929, %v208
  %v1979 = vmul.f32 %v1953, %v209
  %v1980 = vmul.f32 %v1946, %v206
  %v1981 = vmul.f32 %v1938, %v207
  %v1982 = vmul.f32 %v1930, %v208
  %v1983 = vmul.f32 %v1954, %v209
  %v1984 = vmul.f32 %v1947, %v206
  %v1985 = vmul.f32 %v1939, %v207
  %v1986 = vmul.f32 %v1931, %v208
  %v1987 = vmul.f32 %v1955, %v209
  %v1989 = vsel %vm606, %v1859, 0
  %1991 = vmatpush.msra.mxu0 0.0
  %1992 = vmatpush.msra.mxu0 0.0
  %1993 = vmatpush.msra.mxu0 0.0
  %1994 = vmatpush.msra.mxu0 0.0
  %1995 = vmatpush.msra.mxu0 0.0
  %1996 = vmatpush.msra.mxu0 0.0
  %1997 = vmatpush.msra.mxu0 0.0
  %1998 = vmatpush.msra.mxu0 0.0
  %1999 = vmatpush.msra.mxu0 %v1984
  %2000 = vmatpush.msra.mxu0 %v1980
  %2001 = vmatpush.msra.mxu0 %v1976
  %2002 = vmatpush.msra.mxu0 %v1972
  %2003 = vmatpush.msra.mxu0 %v1968
  %2004 = vmatpush.msra.mxu0 %v1964
  %2005 = vmatpush.msra.mxu0 %v1960
  %2006 = vmatpush.msra.mxu0 %v1956
  %2007 = vmatmul.f32.gmra.mxu0 %v1989
  %v2008 = vpop.f32.mrf.mxu0
  %v2009 = vadd.f32 0.0, %v2008
  %2010 = vdwg.mxu0
  %2011 = vmatpush.msra.mxu0 0.0
  %2012 = vmatpush.msra.mxu0 0.0
  %2013 = vmatpush.msra.mxu0 0.0
  %2014 = vmatpush.msra.mxu0 0.0
  %2015 = vmatpush.msra.mxu0 0.0
  %2016 = vmatpush.msra.mxu0 0.0
  %2017 = vmatpush.msra.mxu0 0.0
  %2018 = vmatpush.msra.mxu0 0.0
  %2019 = vmatpush.msra.mxu0 %v1985
  %2020 = vmatpush.msra.mxu0 %v1981
  %2021 = vmatpush.msra.mxu0 %v1977
  %2022 = vmatpush.msra.mxu0 %v1973
  %2023 = vmatpush.msra.mxu0 %v1969
  %2024 = vmatpush.msra.mxu0 %v1965
  %2025 = vmatpush.msra.mxu0 %v1961
  %2026 = vmatpush.msra.mxu0 %v1957
  %2027 = vmatmul.f32.gmra.mxu0 %v1989
  %v2028 = vpop.f32.mrf.mxu0
  %v2029 = vadd.f32 0.0, %v2028
  %2030 = vdwg.mxu0
  %2031 = vmatpush.msra.mxu0 0.0
  %2032 = vmatpush.msra.mxu0 0.0
  %2033 = vmatpush.msra.mxu0 0.0
  %2034 = vmatpush.msra.mxu0 0.0
  %2035 = vmatpush.msra.mxu0 0.0
  %2036 = vmatpush.msra.mxu0 0.0
  %2037 = vmatpush.msra.mxu0 0.0
  %2038 = vmatpush.msra.mxu0 0.0
  %2039 = vmatpush.msra.mxu0 %v1986
  %2040 = vmatpush.msra.mxu0 %v1982
  %2041 = vmatpush.msra.mxu0 %v1978
  %2042 = vmatpush.msra.mxu0 %v1974
  %2043 = vmatpush.msra.mxu0 %v1970
  %2044 = vmatpush.msra.mxu0 %v1966
  %2045 = vmatpush.msra.mxu0 %v1962
  %2046 = vmatpush.msra.mxu0 %v1958
  %2047 = vmatmul.f32.gmra.mxu0 %v1989
  %v2048 = vpop.f32.mrf.mxu0
  %v2049 = vadd.f32 0.0, %v2048
  %2050 = vdwg.mxu0
  %2051 = vmatpush.msra.mxu0 0.0
  %2052 = vmatpush.msra.mxu0 0.0
  %2053 = vmatpush.msra.mxu0 0.0
  %2054 = vmatpush.msra.mxu0 0.0
  %2055 = vmatpush.msra.mxu0 0.0
  %2056 = vmatpush.msra.mxu0 0.0
  %2057 = vmatpush.msra.mxu0 0.0
  %2058 = vmatpush.msra.mxu0 0.0
  %2059 = vmatpush.msra.mxu0 %v1987
  %2060 = vmatpush.msra.mxu0 %v1983
  %2061 = vmatpush.msra.mxu0 %v1979
  %2062 = vmatpush.msra.mxu0 %v1975
  %2063 = vmatpush.msra.mxu0 %v1971
  %2064 = vmatpush.msra.mxu0 %v1967
  %2065 = vmatpush.msra.mxu0 %v1963
  %2066 = vmatpush.msra.mxu0 %v1959
  %2067 = vmatmul.f32.gmra.mxu0 %v1989
  %v2068 = vpop.f32.mrf.mxu0
  %v2069 = vadd.f32 0.0, %v2068
  %2070 = vdwg.mxu0
  %v2071 = vadd.f32 %v1854, %v2009
  %v2072 = vadd.f32 %v1855, %v2029
  %v2073 = vadd.f32 %v1856, %v2049
  %v2074 = vadd.f32 %v1857, %v2069
  %s2075 = scalar_lea.vmem %s3, 32
  %v2076 = vld [vmem:[%s2075] sm:$0xf]
  %2077 = vrot.lane.b32.xlu0 %v443, 111
  %v2078 = vpop.permute.xlu0 %2077
  %2079 = vrot.lane.b32.xlu0 %v447, 111
  %v2080 = vpop.permute.xlu0 %2079
  %2081 = vrot.lane.b32.xlu0 %v451, 111
  %v2082 = vpop.permute.xlu0 %2081
  %2083 = vrot.lane.b32.xlu0 %v455, 111
  %v2084 = vpop.permute.xlu0 %2083
  %2085 = vrot.lane.b32.xlu0 %v459, 111
  %v2086 = vpop.permute.xlu0 %2085
  %2087 = vrot.lane.b32.xlu0 %v463, 111
  %v2088 = vpop.permute.xlu0 %2087
  %2089 = vrot.lane.b32.xlu0 %v467, 111
  %v2090 = vpop.permute.xlu0 %2089
  %2091 = vrot.lane.b32.xlu0 %v471, 111
  %v2092 = vpop.permute.xlu0 %2091
  %2093 = vrot.lane.b32.xlu0 %v444, 111
  %v2094 = vpop.permute.xlu0 %2093
  %2095 = vrot.lane.b32.xlu0 %v448, 111
  %v2096 = vpop.permute.xlu0 %2095
  %2097 = vrot.lane.b32.xlu0 %v452, 111
  %v2098 = vpop.permute.xlu0 %2097
  %2099 = vrot.lane.b32.xlu0 %v456, 111
  %v2100 = vpop.permute.xlu0 %2099
  %2101 = vrot.lane.b32.xlu0 %v460, 111
  %v2102 = vpop.permute.xlu0 %2101
  %2103 = vrot.lane.b32.xlu0 %v464, 111
  %v2104 = vpop.permute.xlu0 %2103
  %2105 = vrot.lane.b32.xlu0 %v468, 111
  %v2106 = vpop.permute.xlu0 %2105
  %2107 = vrot.lane.b32.xlu0 %v472, 111
  %v2108 = vpop.permute.xlu0 %2107
  %2109 = vrot.lane.b32.xlu0 %v445, 111
  %v2110 = vpop.permute.xlu0 %2109
  %2111 = vrot.lane.b32.xlu0 %v449, 111
  %v2112 = vpop.permute.xlu0 %2111
  %2113 = vrot.lane.b32.xlu0 %v453, 111
  %v2114 = vpop.permute.xlu0 %2113
  %2115 = vrot.lane.b32.xlu0 %v457, 111
  %v2116 = vpop.permute.xlu0 %2115
  %2117 = vrot.lane.b32.xlu0 %v461, 111
  %v2118 = vpop.permute.xlu0 %2117
  %2119 = vrot.lane.b32.xlu0 %v465, 111
  %v2120 = vpop.permute.xlu0 %2119
  %2121 = vrot.lane.b32.xlu0 %v469, 111
  %v2122 = vpop.permute.xlu0 %2121
  %2123 = vrot.lane.b32.xlu0 %v473, 111
  %v2124 = vpop.permute.xlu0 %2123
  %2125 = vrot.lane.b32.xlu0 %v446, 111
  %v2126 = vpop.permute.xlu0 %2125
  %2127 = vrot.lane.b32.xlu0 %v450, 111
  %v2128 = vpop.permute.xlu0 %2127
  %2129 = vrot.lane.b32.xlu0 %v454, 111
  %v2130 = vpop.permute.xlu0 %2129
  %2131 = vrot.lane.b32.xlu0 %v458, 111
  %v2132 = vpop.permute.xlu0 %2131
  %2133 = vrot.lane.b32.xlu0 %v462, 111
  %v2134 = vpop.permute.xlu0 %2133
  %2135 = vrot.lane.b32.xlu0 %v466, 111
  %v2136 = vpop.permute.xlu0 %2135
  %2137 = vrot.lane.b32.xlu0 %v470, 111
  %v2138 = vpop.permute.xlu0 %2137
  %2139 = vrot.lane.b32.xlu0 %v474, 111
  %v2140 = vpop.permute.xlu0 %2139
  %v2141 = vsel %vm226, %v2110, %v2126
  %v2142 = vsel %vm226, %v2112, %v2128
  %v2143 = vsel %vm226, %v2114, %v2130
  %v2144 = vsel %vm226, %v2116, %v2132
  %v2145 = vsel %vm226, %v2118, %v2134
  %v2146 = vsel %vm226, %v2120, %v2136
  %v2147 = vsel %vm226, %v2122, %v2138
  %v2148 = vsel %vm226, %v2124, %v2140
  %v2149 = vsel %vm226, %v2094, %v2110
  %v2150 = vsel %vm226, %v2096, %v2112
  %v2151 = vsel %vm226, %v2098, %v2114
  %v2152 = vsel %vm226, %v2100, %v2116
  %v2153 = vsel %vm226, %v2102, %v2118
  %v2154 = vsel %vm226, %v2104, %v2120
  %v2155 = vsel %vm226, %v2106, %v2122
  %v2156 = vsel %vm226, %v2108, %v2124
  %v2157 = vsel %vm226, %v2078, %v2094
  %v2158 = vsel %vm226, %v2080, %v2096
  %v2159 = vsel %vm226, %v2082, %v2098
  %v2160 = vsel %vm226, %v2084, %v2100
  %v2161 = vsel %vm226, %v2086, %v2102
  %v2162 = vsel %vm226, %v2088, %v2104
  %v2163 = vsel %vm226, %v2090, %v2106
  %v2164 = vsel %vm226, %v2092, %v2108
  %v2165 = vsel %vm226, %v2126, %v2078
  %v2166 = vsel %vm226, %v2128, %v2080
  %v2167 = vsel %vm226, %v2130, %v2082
  %v2168 = vsel %vm226, %v2132, %v2084
  %v2169 = vsel %vm226, %v2134, %v2086
  %v2170 = vsel %vm226, %v2136, %v2088
  %v2171 = vsel %vm226, %v2138, %v2090
  %v2172 = vsel %vm226, %v2140, %v2092
  %v2173 = vmul.f32 %v2157, %v234
  %v2174 = vmul.f32 %v2149, %v235
  %v2175 = vmul.f32 %v2141, %v236
  %v2176 = vmul.f32 %v2165, %v237
  %v2177 = vmul.f32 %v2158, %v234
  %v2178 = vmul.f32 %v2150, %v235
  %v2179 = vmul.f32 %v2142, %v236
  %v2180 = vmul.f32 %v2166, %v237
  %v2181 = vmul.f32 %v2159, %v234
  %v2182 = vmul.f32 %v2151, %v235
  %v2183 = vmul.f32 %v2143, %v236
  %v2184 = vmul.f32 %v2167, %v237
  %v2185 = vmul.f32 %v2160, %v234
  %v2186 = vmul.f32 %v2152, %v235
  %v2187 = vmul.f32 %v2144, %v236
  %v2188 = vmul.f32 %v2168, %v237
  %v2189 = vmul.f32 %v2161, %v234
  %v2190 = vmul.f32 %v2153, %v235
  %v2191 = vmul.f32 %v2145, %v236
  %v2192 = vmul.f32 %v2169, %v237
  %v2193 = vmul.f32 %v2162, %v234
  %v2194 = vmul.f32 %v2154, %v235
  %v2195 = vmul.f32 %v2146, %v236
  %v2196 = vmul.f32 %v2170, %v237
  %v2197 = vmul.f32 %v2163, %v234
  %v2198 = vmul.f32 %v2155, %v235
  %v2199 = vmul.f32 %v2147, %v236
  %v2200 = vmul.f32 %v2171, %v237
  %v2201 = vmul.f32 %v2164, %v234
  %v2202 = vmul.f32 %v2156, %v235
  %v2203 = vmul.f32 %v2148, %v236
  %v2204 = vmul.f32 %v2172, %v237
  %v2206 = vsel %vm606, %v2076, 0
  %2208 = vmatpush.msra.mxu0 0.0
  %2209 = vmatpush.msra.mxu0 0.0
  %2210 = vmatpush.msra.mxu0 0.0
  %2211 = vmatpush.msra.mxu0 0.0
  %2212 = vmatpush.msra.mxu0 0.0
  %2213 = vmatpush.msra.mxu0 0.0
  %2214 = vmatpush.msra.mxu0 0.0
  %2215 = vmatpush.msra.mxu0 0.0
  %2216 = vmatpush.msra.mxu0 %v2201
  %2217 = vmatpush.msra.mxu0 %v2197
  %2218 = vmatpush.msra.mxu0 %v2193
  %2219 = vmatpush.msra.mxu0 %v2189
  %2220 = vmatpush.msra.mxu0 %v2185
  %2221 = vmatpush.msra.mxu0 %v2181
  %2222 = vmatpush.msra.mxu0 %v2177
  %2223 = vmatpush.msra.mxu0 %v2173
  %2224 = vmatmul.f32.gmra.mxu0 %v2206
  %v2225 = vpop.f32.mrf.mxu0
  %v2226 = vadd.f32 0.0, %v2225
  %2227 = vdwg.mxu0
  %2228 = vmatpush.msra.mxu0 0.0
  %2229 = vmatpush.msra.mxu0 0.0
  %2230 = vmatpush.msra.mxu0 0.0
  %2231 = vmatpush.msra.mxu0 0.0
  %2232 = vmatpush.msra.mxu0 0.0
  %2233 = vmatpush.msra.mxu0 0.0
  %2234 = vmatpush.msra.mxu0 0.0
  %2235 = vmatpush.msra.mxu0 0.0
  %2236 = vmatpush.msra.mxu0 %v2202
  %2237 = vmatpush.msra.mxu0 %v2198
  %2238 = vmatpush.msra.mxu0 %v2194
  %2239 = vmatpush.msra.mxu0 %v2190
  %2240 = vmatpush.msra.mxu0 %v2186
  %2241 = vmatpush.msra.mxu0 %v2182
  %2242 = vmatpush.msra.mxu0 %v2178
  %2243 = vmatpush.msra.mxu0 %v2174
  %2244 = vmatmul.f32.gmra.mxu0 %v2206
  %v2245 = vpop.f32.mrf.mxu0
  %v2246 = vadd.f32 0.0, %v2245
  %2247 = vdwg.mxu0
  %2248 = vmatpush.msra.mxu0 0.0
  %2249 = vmatpush.msra.mxu0 0.0
  %2250 = vmatpush.msra.mxu0 0.0
  %2251 = vmatpush.msra.mxu0 0.0
  %2252 = vmatpush.msra.mxu0 0.0
  %2253 = vmatpush.msra.mxu0 0.0
  %2254 = vmatpush.msra.mxu0 0.0
  %2255 = vmatpush.msra.mxu0 0.0
  %2256 = vmatpush.msra.mxu0 %v2203
  %2257 = vmatpush.msra.mxu0 %v2199
  %2258 = vmatpush.msra.mxu0 %v2195
  %2259 = vmatpush.msra.mxu0 %v2191
  %2260 = vmatpush.msra.mxu0 %v2187
  %2261 = vmatpush.msra.mxu0 %v2183
  %2262 = vmatpush.msra.mxu0 %v2179
  %2263 = vmatpush.msra.mxu0 %v2175
  %2264 = vmatmul.f32.gmra.mxu0 %v2206
  %v2265 = vpop.f32.mrf.mxu0
  %v2266 = vadd.f32 0.0, %v2265
  %2267 = vdwg.mxu0
  %2268 = vmatpush.msra.mxu0 0.0
  %2269 = vmatpush.msra.mxu0 0.0
  %2270 = vmatpush.msra.mxu0 0.0
  %2271 = vmatpush.msra.mxu0 0.0
  %2272 = vmatpush.msra.mxu0 0.0
  %2273 = vmatpush.msra.mxu0 0.0
  %2274 = vmatpush.msra.mxu0 0.0
  %2275 = vmatpush.msra.mxu0 0.0
  %2276 = vmatpush.msra.mxu0 %v2204
  %2277 = vmatpush.msra.mxu0 %v2200
  %2278 = vmatpush.msra.mxu0 %v2196
  %2279 = vmatpush.msra.mxu0 %v2192
  %2280 = vmatpush.msra.mxu0 %v2188
  %2281 = vmatpush.msra.mxu0 %v2184
  %2282 = vmatpush.msra.mxu0 %v2180
  %2283 = vmatpush.msra.mxu0 %v2176
  %2284 = vmatmul.f32.gmra.mxu0 %v2206
  %v2285 = vpop.f32.mrf.mxu0
  %v2286 = vadd.f32 0.0, %v2285
  %2287 = vdwg.mxu0
  %v2288 = vadd.f32 %v2071, %v2226
  %v2289 = vadd.f32 %v2072, %v2246
  %v2290 = vadd.f32 %v2073, %v2266
  %v2291 = vadd.f32 %v2074, %v2286
  %v2292 = vadd.f32 %v2288, %v17
  %v2293 = vadd.f32 %v2289, %v18
  %v2294 = vadd.f32 %v2290, %v19
  %v2295 = vadd.f32 %v2291, %v20
  %v2300 = vrot.slane %v2293, 4
  %v2301 = vrot.slane %v2295, 4
  %vm2302 = vcmask 1043456
  %v2303 = vsel %vm2302, %v2292, %v2300
  %v2304 = vsel %vm2302, %v2294, %v2301
  %2307 = vst [vmem:[%s4] sm:$0xff] %v2303
  %2308 = vst [vmem:[%s4 + $0x8] sm:$0xff] %v2304
  // Predicated region
  $region18: #{br_forward.1} parent=0 // pred_check
    _
  $region19: #{br_forward.1} parent=0 // pred_check_branch
    %2310 = sbr.rel (0) target = $region21
  $region20: #{br_forward.1} parent=0 // pred_region
    _
  $region21: #{br_forward.1} parent=0 // pred_fallthru
    _
  // Predicated region
  $region22: #{br_forward.1} parent=0 // pred_check
    _
  $region23: #{br_forward.1} parent=0 // pred_check_branch
    %2312 = sbr.rel (0) target = $region25
  $region24: #{br_forward.1} parent=0 // pred_region
    _
  $region25: #{br_forward.1} parent=0 // pred_fallthru
    _

</llo_original>
